<compile_context>
chip_gen: v7x
topology: tpu7x:2x2x1
jax: 0.10.0
libtpu: 0.0.40
codegen_flags: <defaults>
</compile_context>

<pallas_src>
import functools
import math

import jax
import jax.numpy as jnp
from jax import lax
from jax.experimental import pallas as pl
from jax.experimental.pallas import tpu as pltpu

# ---------------- problem sizes (small, deterministic) ----------------
B = 2               # batch
L = 8               # query length
S = 8               # key/value length (must equal L: prior uses an LxL |i-j| matrix)
NUM_HIDDENS = 32    # num_hiddens
H = 4               # num_heads
E = NUM_HIDDENS // H    # per-head query/key/value dim
QUERY_SIZE = NUM_HIDDENS   # W_s consumes the raw query tensor -> query_size == num_hiddens
KEY_SIZE = NUM_HIDDENS
VALUE_SIZE = NUM_HIDDENS

_INV_SQRT_2PI = 1.0 / math.sqrt(2.0 * math.pi)
_LN3 = math.log(3.0)


def _anomaly_mha_kernel(x_ref, wh_ref, ws_ref, out_ref, *,
                        batch, q_len, kv_len, heads, nh, d_in):
    """Single invocation, everything resident in VMEM.

    x_ref   : (3*B*L, d)        rows [0:N)=queries, [N:2N)=keys, [2N:3N)=values
    wh_ref  : (4*H, E, d)       per-head weights: q,k,v in 'hed' layout (contract last),
                                then W_o as (H, E, nh) row-blocks ('hef')
    ws_ref  : (d, H*S)          sigma weight pre-expanded across the S lanes of each head
    out_ref : (B*L, nh + H*S)   merged lane-dense output: [ W_o(out) | prior ]
    """
    e_h = nh // heads
    scale = 1.0 / math.sqrt(e_h)
    n_rows = batch * q_len
    n_kv = batch * kv_len

    # ---- free leading-dim ref views (no lane slices anywhere in this kernel) ----
    xq = x_ref[0:n_rows, :]
    xk = x_ref[n_rows:n_rows + n_kv, :]
    xv = x_ref[n_rows + n_kv:n_rows + 2 * n_kv, :]

    wq = wh_ref[0:heads, :, :]              # (H, E, d)
    wk = wh_ref[heads:2 * heads, :, :]
    wv = wh_ref[2 * heads:3 * heads, :, :]
    wo = wh_ref[3 * heads:4 * heads, :, :]  # (H, E, nh)

    # ---- per-head projections as single-batch-dim batched matmuls (head = leading) ----
    # Keeping the head axis OUTERMOST means all later regrouping is leading-dim-only
    # reshapes; no in-kernel lane slices and no second-minor transposes.
    q_h = jnp.einsum('hnd,hed->hne', jnp.broadcast_to(xq, (heads, n_rows, d_in)), wq,
                     preferred_element_type=jnp.float32) * scale      # scale applied once
    k_h = jnp.einsum('hnd,hed->hne', jnp.broadcast_to(xk, (heads, n_kv, d_in)), wk,
                     preferred_element_type=jnp.float32)
    v_h = jnp.einsum('hnd,hed->hne', jnp.broadcast_to(xv, (heads, n_kv, d_in)), wv,
                     preferred_element_type=jnp.float32)

    # (H, B*L, E) -> (H*B, L, E): pure leading-dim regroup (minor dim untouched)
    q_n = q_h.reshape(heads * batch, q_len, e_h)
    k_n = k_h.reshape(heads * batch, kv_len, e_h)
    v_n = v_h.reshape(heads * batch, kv_len, e_h)

    # ---- attention over ALL heads: one pair of batched dot_generals ----
    s = jnp.einsum('nle,nse->nls', q_n, k_n, preferred_element_type=jnp.float32)
    m = jnp.max(s, axis=-1, keepdims=True)
    ex = jnp.exp(s - m)
    p = ex * pl.reciprocal(jnp.sum(ex, axis=-1, keepdims=True), approx=True)
    ctx = jnp.einsum('nls,nsd->nld', p, v_n, preferred_element_type=jnp.float32)

    # ---- output projection: per-head row-blocks of W_o, summed over heads ----
    ctx_h = ctx.reshape(heads, n_rows, e_h)                          # (H, B*L, E)
    out = jnp.sum(jnp.einsum('hne,hef->hnf', ctx_h, wo,
                             preferred_element_type=jnp.float32), axis=0)   # (B*L, nh)

    # ---- Gaussian prior, vectorized over batch AND heads ----
    # out_ref lane j (prior part) = h*S + s ; row n = b*L + l
    raw = jnp.dot(xq, ws_ref[...], preferred_element_type=jnp.float32)      # (N, H*S)
    sg = jax.nn.sigmoid(raw * 5.0) + 1e-5
    inv_sigma = pl.reciprocal(jnp.exp(sg * _LN3) - 1.0)   # exact recip (feeds KL term)
    row = lax.broadcasted_iota(jnp.int32, (n_rows, heads * kv_len), 0)
    col = lax.broadcasted_iota(jnp.int32, (n_rows, heads * kv_len), 1)
    # L and S are powers of two here; at other sizes build dist from two small iotas.
    dist = jnp.abs((row % q_len) - (col % kv_len)).astype(jnp.float32)       # |l - s|
    prior = (_INV_SQRT_2PI * inv_sigma) * jnp.exp(-0.5 * (dist * inv_sigma) ** 2)

    # ---- single lane-dense merged store ----
    out_ref[...] = jnp.concatenate([out, prior], axis=-1)


def anomaly_mha_forward(queries, keys, values, w_q, w_k, w_v, w_s, w_o):
    """Returns (output (B, L, num_hiddens), prior (B, H, L, S))."""
    b, l, dq = queries.shape
    _, s, dk = keys.shape
    _, _, dv = values.shape
    nh = w_q.shape[1]
    heads = w_s.shape[1]
    e_h = nh // heads
    assert l == s, "Anomaly prior uses an LxL |i-j| matrix; requires L == S"
    assert nh % heads == 0
    # module-intrinsic (W_s consumes raw queries) + packing requirement for the slabs
    assert dq == dk == dv == nh

    n = b * l
    # -------- wrapper-side packing (pure JAX, outside the kernel) --------
    x_all = jnp.concatenate([queries.reshape(n, dq),
                             keys.reshape(b * s, dk),
                             values.reshape(b * s, dv)], axis=0)            # (3N, d)

    def per_head(w):   # (d, nh) -> (H, E, d): 'hed' layout so the kernel contracts last
        return jnp.transpose(w.reshape(w.shape[0], heads, e_h), (1, 2, 0))

    w_heads = jnp.concatenate([per_head(w_q), per_head(w_k), per_head(w_v),
                               w_o.reshape(heads, e_h, nh)], axis=0)        # (4H, E, d)
    w_sig = jnp.repeat(w_s, s, axis=1)                                      # (d, H*S)

    vmem = functools.partial(pl.BlockSpec, memory_space=pltpu.MemorySpace.VMEM)
    merged = pl.pallas_call(
        functools.partial(_anomaly_mha_kernel, batch=b, q_len=l, kv_len=s,
                          heads=heads, nh=nh, d_in=dq),
        out_shape=jax.ShapeDtypeStruct((n, nh + heads * s), jnp.float32),
        in_specs=[vmem(), vmem(), vmem()],
        out_specs=vmem(),
    )(x_all, w_heads, w_sig)

    out = merged[:, :nh].reshape(b, l, nh)
    prior = merged[:, nh:].reshape(b, l, heads, s).transpose(0, 2, 1, 3)    # (B, H, L, S)
    return out, prior


def _reference(queries, keys, values, w_q, w_k, w_v, w_s, w_o):
    """Pure-JAX replica of the PyTorch forward for validation."""
    b, l, _ = queries.shape
    _, s, _ = keys.shape
    qp = (queries @ w_q).reshape(b, l, H, E)
    kp = (keys @ w_k).reshape(b, s, H, E)
    vp = (values @ w_v).reshape(b, s, H, E)
    sigma = (queries @ w_s).reshape(b, l, H)

    scale = 1.0 / math.sqrt(E)
    attn = scale * jnp.einsum('blhe,bshe->bhls', qp, kp)

    sigma = jnp.transpose(sigma, (0, 2, 1))                    # (B, H, L)
    sigma = jax.nn.sigmoid(sigma * 5.0) + 1e-5
    sigma = jnp.power(3.0, sigma) - 1.0
    sigma = sigma[..., None]                                   # (B, H, L, 1)

    idx = jnp.arange(l, dtype=jnp.float32)
    dist = jnp.abs(idx[:, None] - idx[None, :])[None, None]    # (1, 1, L, L)
    prior = (1.0 / (math.sqrt(2.0 * math.pi) * sigma)
             * jnp.exp(-dist ** 2 / 2.0 / sigma ** 2))

    series = jax.nn.softmax(attn, axis=-1)
    v_out = jnp.einsum('bhls,bshd->blhd', series, vp)
    out = v_out.reshape(b, l, H * E)
    return out @ w_o, prior


if __name__ == "__main__":
    key = jax.random.PRNGKey(0)
    k_q, k_k, k_v, k_wq, k_wk, k_wv, k_ws, k_wo = jax.random.split(key, 8)

    queries = jax.random.normal(k_q, (B, L, QUERY_SIZE), dtype=jnp.float32)
    keys = jax.random.normal(k_k, (B, S, KEY_SIZE), dtype=jnp.float32)
    values = jax.random.normal(k_v, (B, S, VALUE_SIZE), dtype=jnp.float32)

    # deterministic parameter init (stored as (in, out); PyTorch Linear is x @ W.T)
    def init_w(k, fan_in, fan_out):
        bound = 1.0 / math.sqrt(fan_in)
        return jax.random.uniform(k, (fan_in, fan_out), jnp.float32, -bound, bound)

    w_q = init_w(k_wq, QUERY_SIZE, NUM_HIDDENS)
    w_k = init_w(k_wk, KEY_SIZE, NUM_HIDDENS)
    w_v = init_w(k_wv, VALUE_SIZE, NUM_HIDDENS)
    w_s = init_w(k_ws, NUM_HIDDENS, H)
    w_o = init_w(k_wo, NUM_HIDDENS, NUM_HIDDENS)

    out, prior = anomaly_mha_forward(queries, keys, values, w_q, w_k, w_v, w_s, w_o)
    out = jax.block_until_ready(out)
    prior = jax.block_until_ready(prior)

    ref_out, ref_prior = _reference(queries, keys, values, w_q, w_k, w_v, w_s, w_o)
    assert out.shape == (B, L, NUM_HIDDENS)
    assert prior.shape == (B, H, L, S)
    # tolerance accounts for pl.reciprocal(approx=True) in the softmax denominator
    assert jnp.allclose(out, ref_out, atol=5e-3, rtol=5e-3)
    assert jnp.allclose(prior, ref_prior, atol=5e-3, rtol=5e-3)

    print("KERNEL_OK")
</pallas_src>

<mosaic_0001>
module attributes {stable_mosaic.version = 11 : i64} {
  func.func @_anomaly_mha_kernel(%arg0: memref<48x32xf32, #tpu.memory_space<vmem>>, %arg1: memref<16x8x32xf32, #tpu.memory_space<vmem>>, %arg2: memref<32x32xf32, #tpu.memory_space<vmem>>, %arg3: memref<16x64xf32, #tpu.memory_space<vmem>>) attributes {dimension_semantics = [], scalar_prefetch = 0 : i64, scratch_operands = 0 : i64, tpu.core_type = #tpu.core_type<tc>} {
    %c0 = arith.constant 0 : index
    %c0_0 = arith.constant 0 : index
    %0 = vector.load %arg0[%c0, %c0_0] : memref<48x32xf32, #tpu.memory_space<vmem>>, vector<16x32xf32>
    %c16 = arith.constant 16 : index
    %c0_1 = arith.constant 0 : index
    %1 = vector.load %arg0[%c16, %c0_1] : memref<48x32xf32, #tpu.memory_space<vmem>>, vector<16x32xf32>
    %c32 = arith.constant 32 : index
    %c0_2 = arith.constant 0 : index
    %2 = vector.load %arg0[%c32, %c0_2] : memref<48x32xf32, #tpu.memory_space<vmem>>, vector<16x32xf32>
    %c0_3 = arith.constant 0 : index
    %c0_4 = arith.constant 0 : index
    %c0_5 = arith.constant 0 : index
    %3 = vector.load %arg1[%c0_3, %c0_4, %c0_5] : memref<16x8x32xf32, #tpu.memory_space<vmem>>, vector<4x8x32xf32>
    %c4 = arith.constant 4 : index
    %c0_6 = arith.constant 0 : index
    %c0_7 = arith.constant 0 : index
    %4 = vector.load %arg1[%c4, %c0_6, %c0_7] : memref<16x8x32xf32, #tpu.memory_space<vmem>>, vector<4x8x32xf32>
    %c8 = arith.constant 8 : index
    %c0_8 = arith.constant 0 : index
    %c0_9 = arith.constant 0 : index
    %5 = vector.load %arg1[%c8, %c0_8, %c0_9] : memref<16x8x32xf32, #tpu.memory_space<vmem>>, vector<4x8x32xf32>
    %c12 = arith.constant 12 : index
    %c0_10 = arith.constant 0 : index
    %c0_11 = arith.constant 0 : index
    %6 = vector.load %arg1[%c12, %c0_10, %c0_11] : memref<16x8x32xf32, #tpu.memory_space<vmem>>, vector<4x8x32xf32>
    %7 = vector.shape_cast %0 : vector<16x32xf32> to vector<1x16x32xf32>
    %8 = vector.broadcast %7 : vector<1x16x32xf32> to vector<4x16x32xf32>
    "tpu.trace_start"() <{level = 10 : i32, message = "hnd,hed->hne"}> : () -> ()
    %cst = arith.constant dense<0.000000e+00> : vector<4x16x8xf32>
    %9 = tpu.matmul %8, %3, %cst {dimension_numbers = #tpu.dot_dimension_numbers<[2], [2], [1], [1], [0, 0, 0, 1, 1, 1], [0], [0]>} : vector<4x16x32xf32>, vector<4x8x32xf32>, vector<4x16x8xf32> -> vector<4x16x8xf32>
    "tpu.trace_stop"() : () -> ()
    %cst_12 = arith.constant 0.353553385 : f32
    %10 = vector.broadcast %cst_12 : f32 to vector<4x16x8xf32>
    %11 = arith.mulf %9, %10 : vector<4x16x8xf32>
    %12 = vector.shape_cast %1 : vector<16x32xf32> to vector<1x16x32xf32>
    %13 = vector.broadcast %12 : vector<1x16x32xf32> to vector<4x16x32xf32>
    "tpu.trace_start"() <{level = 10 : i32, message = "hnd,hed->hne"}> : () -> ()
    %cst_13 = arith.constant dense<0.000000e+00> : vector<4x16x8xf32>
    %14 = tpu.matmul %13, %4, %cst_13 {dimension_numbers = #tpu.dot_dimension_numbers<[2], [2], [1], [1], [0, 0, 0, 1, 1, 1], [0], [0]>} : vector<4x16x32xf32>, vector<4x8x32xf32>, vector<4x16x8xf32> -> vector<4x16x8xf32>
    "tpu.trace_stop"() : () -> ()
    %15 = vector.shape_cast %2 : vector<16x32xf32> to vector<1x16x32xf32>
    %16 = vector.broadcast %15 : vector<1x16x32xf32> to vector<4x16x32xf32>
    "tpu.trace_start"() <{level = 10 : i32, message = "hnd,hed->hne"}> : () -> ()
    %cst_14 = arith.constant dense<0.000000e+00> : vector<4x16x8xf32>
    %17 = tpu.matmul %16, %5, %cst_14 {dimension_numbers = #tpu.dot_dimension_numbers<[2], [2], [1], [1], [0, 0, 0, 1, 1, 1], [0], [0]>} : vector<4x16x32xf32>, vector<4x8x32xf32>, vector<4x16x8xf32> -> vector<4x16x8xf32>
    "tpu.trace_stop"() : () -> ()
    %18 = vector.shape_cast %11 : vector<4x16x8xf32> to vector<8x8x8xf32>
    %19 = vector.shape_cast %14 : vector<4x16x8xf32> to vector<8x8x8xf32>
    %20 = vector.shape_cast %17 : vector<4x16x8xf32> to vector<8x8x8xf32>
    "tpu.trace_start"() <{level = 10 : i32, message = "nle,nse->nls"}> : () -> ()
    %cst_15 = arith.constant dense<0.000000e+00> : vector<8x8x8xf32>
    %21 = tpu.matmul %18, %19, %cst_15 {dimension_numbers = #tpu.dot_dimension_numbers<[2], [2], [1], [1], [0, 0, 0, 1, 1, 1], [0], [0]>} : vector<8x8x8xf32>, vector<8x8x8xf32>, vector<8x8x8xf32> -> vector<8x8x8xf32>
    "tpu.trace_stop"() : () -> ()
    %cst_16 = arith.constant dense<0xFF800000> : vector<8x8xf32>
    %22 = vector.multi_reduction <maximumf>, %21, %cst_16 [2] : vector<8x8x8xf32> to vector<8x8xf32>
    %23 = vector.shape_cast %22 : vector<8x8xf32> to vector<8x8x1xf32>
    %24 = vector.broadcast %23 : vector<8x8x1xf32> to vector<8x8x8xf32>
    %25 = arith.subf %21, %24 : vector<8x8x8xf32>
    %26 = math.exp %25 : vector<8x8x8xf32>
    %cst_17 = arith.constant dense<0.000000e+00> : vector<8x8xf32>
    %27 = vector.multi_reduction <add>, %26, %cst_17 [2] : vector<8x8x8xf32> to vector<8x8xf32>
    %28 = vector.shape_cast %27 : vector<8x8xf32> to vector<8x8x1xf32>
    %29 = tpu.reciprocal %28 {approx = true} : vector<8x8x1xf32> -> vector<8x8x1xf32>
    %30 = vector.broadcast %29 : vector<8x8x1xf32> to vector<8x8x8xf32>
    %31 = arith.mulf %26, %30 : vector<8x8x8xf32>
    "tpu.trace_start"() <{level = 10 : i32, message = "nls,nsd->nld"}> : () -> ()
    %cst_18 = arith.constant dense<0.000000e+00> : vector<8x8x8xf32>
    %32 = tpu.matmul %31, %20, %cst_18 {dimension_numbers = #tpu.dot_dimension_numbers<[2], [1], [1], [2], [0, 0, 0, 1, 1, 2], [0], [0]>} : vector<8x8x8xf32>, vector<8x8x8xf32>, vector<8x8x8xf32> -> vector<8x8x8xf32>
    "tpu.trace_stop"() : () -> ()
    %33 = vector.shape_cast %32 : vector<8x8x8xf32> to vector<4x16x8xf32>
    "tpu.trace_start"() <{level = 10 : i32, message = "hne,hef->hnf"}> : () -> ()
    %cst_19 = arith.constant dense<0.000000e+00> : vector<4x16x32xf32>
    %34 = tpu.matmul %33, %6, %cst_19 {dimension_numbers = #tpu.dot_dimension_numbers<[2], [1], [1], [2], [0, 0, 0, 1, 1, 2], [0], [0]>} : vector<4x16x8xf32>, vector<4x8x32xf32>, vector<4x16x32xf32> -> vector<4x16x32xf32>
    "tpu.trace_stop"() : () -> ()
    %cst_20 = arith.constant dense<0.000000e+00> : vector<16x32xf32>
    %35 = vector.multi_reduction <add>, %34, %cst_20 [0] : vector<4x16x32xf32> to vector<16x32xf32>
    %c0_21 = arith.constant 0 : index
    %c0_22 = arith.constant 0 : index
    %36 = vector.load %arg2[%c0_21, %c0_22] : memref<32x32xf32, #tpu.memory_space<vmem>>, vector<32x32xf32>
    %cst_23 = arith.constant dense<0.000000e+00> : vector<16x32xf32>
    %37 = tpu.matmul %0, %36, %cst_23 {dimension_numbers = #tpu.dot_dimension_numbers<[1], [0], [0], [1], [0, 0, 1, 1], [], []>} : vector<16x32xf32>, vector<32x32xf32>, vector<16x32xf32> -> vector<16x32xf32>
    %cst_24 = arith.constant 5.000000e+00 : f32
    %38 = vector.broadcast %cst_24 : f32 to vector<16x32xf32>
    %39 = arith.mulf %37, %38 : vector<16x32xf32>
    %40 = arith.negf %39 : vector<16x32xf32>
    %41 = math.exp %40 : vector<16x32xf32>
    %cst_25 = arith.constant 1.000000e+00 : f32
    %42 = vector.broadcast %cst_25 : f32 to vector<16x32xf32>
    %43 = arith.addf %42, %41 : vector<16x32xf32>
    %44 = arith.divf %42, %43 : vector<16x32xf32>
    %cst_26 = arith.constant 9.99999974E-6 : f32
    %45 = vector.broadcast %cst_26 : f32 to vector<16x32xf32>
    %46 = arith.addf %44, %45 : vector<16x32xf32>
    %cst_27 = arith.constant 1.09861231 : f32
    %47 = vector.broadcast %cst_27 : f32 to vector<16x32xf32>
    %48 = arith.mulf %46, %47 : vector<16x32xf32>
    %49 = math.exp %48 : vector<16x32xf32>
    %cst_28 = arith.constant 1.000000e+00 : f32
    %50 = vector.broadcast %cst_28 : f32 to vector<16x32xf32>
    %51 = arith.subf %49, %50 : vector<16x32xf32>
    %52 = tpu.reciprocal %51 : vector<16x32xf32> -> vector<16x32xf32>
    %53 = tpu.iota {dimensions = array<i32: 0>} : vector<16x32xi32>
    %54 = tpu.iota {dimensions = array<i32: 1>} : vector<16x32xi32>
    %c8_i32 = arith.constant 8 : i32
    %c0_i32 = arith.constant 0 : i32
    %55 = arith.cmpi eq, %c8_i32, %c0_i32 : i32
    %c1_i32 = arith.constant 1 : i32
    %56 = arith.select %55, %c1_i32, %c8_i32 : i32
    %57 = vector.broadcast %56 : i32 to vector<16x32xi32>
    %58 = arith.remsi %53, %57 : vector<16x32xi32>
    %c0_i32_29 = arith.constant 0 : i32
    %59 = vector.broadcast %c0_i32_29 : i32 to vector<16x32xi32>
    %60 = arith.cmpi ne, %58, %59 : vector<16x32xi32>
    %c0_i32_30 = arith.constant 0 : i32
    %61 = vector.broadcast %c0_i32_30 : i32 to vector<16x32xi32>
    %62 = arith.cmpi slt, %58, %61 : vector<16x32xi32>
    %c0_i32_31 = arith.constant 0 : i32
    %63 = arith.cmpi slt, %56, %c0_i32_31 : i32
    %64 = vector.broadcast %63 : i1 to vector<16x32xi1>
    %65 = vector.broadcast %64 : vector<16x32xi1> to vector<16x32xi1>
    %66 = arith.xori %62, %65 : vector<16x32xi1>
    %67 = arith.andi %66, %60 : vector<16x32xi1>
    %68 = vector.broadcast %56 : i32 to vector<16x32xi32>
    %69 = arith.addi %58, %68 : vector<16x32xi32>
    %70 = arith.select %67, %69, %58 : vector<16x32xi1>, vector<16x32xi32>
    %c8_i32_32 = arith.constant 8 : i32
    %c0_i32_33 = arith.constant 0 : i32
    %71 = arith.cmpi eq, %c8_i32_32, %c0_i32_33 : i32
    %c1_i32_34 = arith.constant 1 : i32
    %72 = arith.select %71, %c1_i32_34, %c8_i32_32 : i32
    %73 = vector.broadcast %72 : i32 to vector<16x32xi32>
    %74 = arith.remsi %54, %73 : vector<16x32xi32>
    %c0_i32_35 = arith.constant 0 : i32
    %75 = vector.broadcast %c0_i32_35 : i32 to vector<16x32xi32>
    %76 = arith.cmpi ne, %74, %75 : vector<16x32xi32>
    %c0_i32_36 = arith.constant 0 : i32
    %77 = vector.broadcast %c0_i32_36 : i32 to vector<16x32xi32>
    %78 = arith.cmpi slt, %74, %77 : vector<16x32xi32>
    %c0_i32_37 = arith.constant 0 : i32
    %79 = arith.cmpi slt, %72, %c0_i32_37 : i32
    %80 = vector.broadcast %79 : i1 to vector<16x32xi1>
    %81 = vector.broadcast %80 : vector<16x32xi1> to vector<16x32xi1>
    %82 = arith.xori %78, %81 : vector<16x32xi1>
    %83 = arith.andi %82, %76 : vector<16x32xi1>
    %84 = vector.broadcast %72 : i32 to vector<16x32xi32>
    %85 = arith.addi %74, %84 : vector<16x32xi32>
    %86 = arith.select %83, %85, %74 : vector<16x32xi1>, vector<16x32xi32>
    %87 = arith.subi %70, %86 : vector<16x32xi32>
    %88 = math.absi %87 : vector<16x32xi32>
    %89 = arith.sitofp %88 : vector<16x32xi32> to vector<16x32xf32>
    %cst_38 = arith.constant 0.398942292 : f32
    %90 = vector.broadcast %cst_38 : f32 to vector<16x32xf32>
    %91 = arith.mulf %90, %52 : vector<16x32xf32>
    %92 = arith.mulf %89, %52 : vector<16x32xf32>
    %93 = arith.mulf %92, %92 : vector<16x32xf32>
    %cst_39 = arith.constant -5.000000e-01 : f32
    %94 = vector.broadcast %cst_39 : f32 to vector<16x32xf32>
    %95 = arith.mulf %94, %93 : vector<16x32xf32>
    %96 = math.exp %95 : vector<16x32xf32>
    %97 = arith.mulf %91, %96 : vector<16x32xf32>
    %98 = tpu.concatenate %35, %97 in 1 : vector<16x32xf32>, vector<16x32xf32> -> vector<16x64xf32>
    %c0_40 = arith.constant 0 : index
    %c0_41 = arith.constant 0 : index
    %99 = vector.load %arg3[%c0_40, %c0_41] : memref<16x64xf32, #tpu.memory_space<vmem>>, vector<16x64xf32>
    tpu.vector_store %arg3[%c0_40, %c0_41], %98 {strides = array<i32>} : memref<16x64xf32, #tpu.memory_space<vmem>>, vector<16x64xf32>,
    return
  }
}

</mosaic_0001>

<llo_original>
// kernel: tpu_custom_call.1
$region0: #{tpu_custom_call.1}
  #allocation0 [shape = 'u32[]', space=smem, size = 0x4, offset = 0x4, fixed_abs, tag = 'smem constant byte address 0x4 - core index']
  #allocation1 [shape = 'u32[144,128]{1,0:T(1,128)}', space=vmem, size = 0x12000, scoped, tag = 'internal scratch']
  %s0 = inlined_call_operand.vmem [shape: f32[48,32], index: 0, kind: input, shape index: {}]
  %s1 = inlined_call_operand.hbm [shape: f32[16,8,32], index: 1, kind: input, shape index: {}]
  %s2 = inlined_call_operand.vmem [shape: f32[32,32], index: 2, kind: input, shape index: {}]
  %s3 = inlined_call_operand.hbm [shape: f32[16,64], index: 3, kind: output, shape index: {}]
  %s4 = sld [smem:[#allocation0]]
  $region26: #{tpu_custom_call.1} parent=0
    _
  %s6 = ssub.s32 1, %s4
  %s7 = scalar_select 0, %s6, %s4
  $region1: #{tpu_custom_call.1} parent=0
    #allocation2 [shape = 'u8[65536]{0}', space=vmem, size = 0x10000, scoped, tag = 'input window, operand 1, single buffered']
    #allocation3 [shape = 's32[1]{0}', space=sflag, size = 0x4, scoped, tag = 'scoped memory for tpu_custom_call.1']
    #allocation4 [shape = 's32[1]{0}', space=sflag, size = 0x4, scoped, tag = 'scoped memory for tpu_custom_call.1']
    #allocation5 [shape = 'u8[8192]{0}', space=vmem, size = 0x2000, scoped, tag = 'output window, operand 0, single buffered']
    %8 = vsyncpa [#allocation3], 0
    %9 = vsyncpa [#allocation4], 0
    // Predicated region
    $region2: #{tpu_custom_call.1} parent=1 // pred_check
      _
    $region3: #{tpu_custom_call.1} parent=1 // pred_check_branch
      %11 = sbr.rel (0) target = $region5
    $region4: #{tpu_custom_call.1} parent=1 // pred_region
      _
    $region5: #{tpu_custom_call.1} parent=1 // pred_fallthru
      _
    // Predicated region
    $region6: #{tpu_custom_call.1} parent=1 // pred_check
      _
    $region7: #{tpu_custom_call.1} parent=1 // pred_check_branch
      %13 = sbr.rel (0) target = $region9
    $region8: #{tpu_custom_call.1} parent=1 // pred_region
      %s15 = ssub.s32 2048, 2048
      %16 = vsyncadd [#allocation3], %s15
      %s17 = sshll.u32 [#allocation2], 4
      %s18 = int_to_ptr.vmem [resolvable:$true] %s17
      %23 = dma.hbm_to_vmem [thread:$0]  %s1, 2048, %s18, [#allocation3], 128, 128, 8
    $region9: #{tpu_custom_call.1} parent=1 // pred_fallthru
      _
    // Predicated region
    $region10: #{tpu_custom_call.1} parent=1 // pred_check
      _
    $region11: #{tpu_custom_call.1} parent=1 // pred_check_branch
      %25 = sbr.rel (0) target = $region13
    $region12: #{tpu_custom_call.1} parent=1 // pred_region
      _
    $region13: #{tpu_custom_call.1} parent=1 // pred_fallthru
      _
    // Predicated region
    $region14: #{tpu_custom_call.1} parent=1 // pred_check
      _
    $region15: #{tpu_custom_call.1} parent=1 // pred_check_branch
      %27 = sbr.rel (0) target = $region17
    $region16: #{tpu_custom_call.1} parent=1 // pred_region
      %28 = dma.done [#allocation3], 2048
    $region17: #{tpu_custom_call.1} parent=1 // pred_fallthru
      _
    %v29 = vld [vmem:[%s0] sm:$0xff]
    %v30 = vld [vmem:[%s0 + $0x8] sm:$0xff]
    %v31 = vld [vmem:[%s0 + $0x10] sm:$0xff]
    %v32 = vld [vmem:[%s0 + $0x18] sm:$0xff]
    %v33 = vld [vmem:[%s0 + $0x20] sm:$0xff]
    %v34 = vld [vmem:[%s0 + $0x28] sm:$0xff]
    %v35 = vld [vmem:[#allocation2] sm:$0xff]
    %v36 = vld [vmem:[#allocation2 + $0x8] sm:$0xff]
    %v37 = vld [vmem:[#allocation2 + $0x10] sm:$0xff]
    %v38 = vld [vmem:[#allocation2 + $0x18] sm:$0xff]
    %s39 = scalar_lea.vmem [#allocation2], 32
    %v40 = vld [vmem:[%s39] sm:$0xff]
    %v41 = vld [vmem:[%s39 + $0x8] sm:$0xff]
    %v42 = vld [vmem:[%s39 + $0x10] sm:$0xff]
    %v43 = vld [vmem:[%s39 + $0x18] sm:$0xff]
    %s44 = scalar_lea.vmem [#allocation2], 64
    %v45 = vld [vmem:[%s44] sm:$0xff]
    %v46 = vld [vmem:[%s44 + $0x8] sm:$0xff]
    %v47 = vld [vmem:[%s44 + $0x10] sm:$0xff]
    %v48 = vld [vmem:[%s44 + $0x18] sm:$0xff]
    %s49 = scalar_lea.vmem [#allocation2], 96
    %v50 = vld [vmem:[%s49] sm:$0xff]
    %v51 = vld [vmem:[%s49 + $0x8] sm:$0xff]
    %v52 = vld [vmem:[%s49 + $0x10] sm:$0xff]
    %v53 = vld [vmem:[%s49 + $0x18] sm:$0xff]
    %vm54 = vcmask 261120
    %v56 = vsel %vm54, %v29, 0
    %v59 = vsel %vm54, %v30, 0
    %v62 = vsel %vm54, %v35, 0
    %64 = vmatprep.subr.mxu0 0.0
    %65 = vmatpush1.xpose.msra.mxu0 %v62
    %66 = vmatprep.subr.mxu0 0.0
    %67 = vmatpush1.xpose.msra.mxu0 0.0
    %68 = vmatprep.subr.mxu0 0.0
    %69 = vmatpush1.xpose.msra.mxu0 0.0
    %70 = vmatprep.subr.mxu0 0.0
    %71 = vmatpush1.xpose.msra.mxu0 0.0
    %72 = vmatprep.subr.mxu0 0.0
    %73 = vmatpush1.xpose.msra.mxu0 0.0
    %74 = vmatprep.subr.mxu0 0.0
    %75 = vmatpush1.xpose.msra.mxu0 0.0
    %76 = vmatprep.subr.mxu0 0.0
    %77 = vmatpush1.xpose.msra.mxu0 0.0
    %78 = vmatprep.subr.mxu0 0.0
    %79 = vmatpush1.xpose.msra.mxu0 0.0
    %80 = vmatprep.subr.mxu0 0.0
    %81 = vmatpush1.xpose.msra.mxu0 0.0
    %82 = vmatprep.subr.mxu0 0.0
    %83 = vmatpush1.xpose.msra.mxu0 0.0
    %84 = vmatprep.subr.mxu0 0.0
    %85 = vmatpush1.xpose.msra.mxu0 0.0
    %86 = vmatprep.subr.mxu0 0.0
    %87 = vmatpush1.xpose.msra.mxu0 0.0
    %88 = vmatprep.subr.mxu0 0.0
    %89 = vmatpush1.xpose.msra.mxu0 0.0
    %90 = vmatprep.subr.mxu0 0.0
    %91 = vmatpush1.xpose.msra.mxu0 0.0
    %92 = vmatprep.subr.mxu0 0.0
    %93 = vmatpush1.xpose.msra.mxu0 0.0
    %94 = vmatprep.subr.mxu0 0.0
    %95 = vmatpush1.xpose.msra.mxu0 0.0
    %96 = vmatprep.subr.mxu0 0.0
    %97 = vmatpush1.xpose.msra.mxu0 0.0
    %98 = vmatprep.subr.mxu0 0.0
    %99 = vmatpush1.xpose.msra.mxu0 0.0
    %100 = vmatprep.subr.mxu0 0.0
    %101 = vmatpush1.xpose.msra.mxu0 0.0
    %102 = vmatprep.subr.mxu0 0.0
    %103 = vmatpush1.xpose.msra.mxu0 0.0
    %104 = vmatprep.subr.mxu0 0.0
    %105 = vmatpush1.xpose.msra.mxu0 0.0
    %106 = vmatprep.subr.mxu0 0.0
    %107 = vmatpush1.xpose.msra.mxu0 0.0
    %108 = vmatprep.subr.mxu0 0.0
    %109 = vmatpush1.xpose.msra.mxu0 0.0
    %110 = vmatprep.subr.mxu0 0.0
    %111 = vmatpush1.xpose.msra.mxu0 0.0
    %112 = vmatprep.subr.mxu0 0.0
    %113 = vmatpush1.xpose.msra.mxu0 0.0
    %114 = vmatprep.subr.mxu0 0.0
    %115 = vmatpush1.xpose.msra.mxu0 0.0
    %116 = vmatprep.subr.mxu0 0.0
    %117 = vmatpush1.xpose.msra.mxu0 0.0
    %118 = vmatprep.subr.mxu0 0.0
    %119 = vmatpush1.xpose.msra.mxu0 0.0
    %120 = vmatprep.subr.mxu0 0.0
    %121 = vmatpush1.xpose.msra.mxu0 0.0
    %122 = vmatprep.subr.mxu0 0.0
    %123 = vmatpush1.xpose.msra.mxu0 0.0
    %124 = vmatprep.subr.mxu0 0.0
    %125 = vmatpush1.xpose.msra.mxu0 0.0
    %126 = vmatprep.subr.mxu0 0.0
    %127 = vmatpush1.xpose.msra.mxu0 0.0
    %128 = vmatprep.mubr.f32.mxu0 0.0
    %129 = vmatmul.mubr.f32.gmra.mrb[0].mxu0 %v56
    %v130 = vpop.f32.mrb[0].mxu0
    %v131 = vadd.f32 0.0, %v130
    %v132 = vpop.f32.mrb[0].mxu0
    %133 = vmatprep.mubr.f32.mxu0 0.0
    %134 = vmatmul.mubr.f32.gmra.mrb[0].mxu0 %v59
    %v135 = vpop.f32.mrb[0].mxu0
    %v136 = vadd.f32 0.0, %v135
    %v137 = vpop.f32.mrb[0].mxu0
    %138 = vdwg.mxu0
    %v140 = vsel %vm54, %v36, 0
    %142 = vmatprep.subr.mxu0 0.0
    %143 = vmatpush1.xpose.msra.mxu0 %v140
    %144 = vmatprep.subr.mxu0 0.0
    %145 = vmatpush1.xpose.msra.mxu0 0.0
    %146 = vmatprep.subr.mxu0 0.0
    %147 = vmatpush1.xpose.msra.mxu0 0.0
    %148 = vmatprep.subr.mxu0 0.0
    %149 = vmatpush1.xpose.msra.mxu0 0.0
    %150 = vmatprep.subr.mxu0 0.0
    %151 = vmatpush1.xpose.msra.mxu0 0.0
    %152 = vmatprep.subr.mxu0 0.0
    %153 = vmatpush1.xpose.msra.mxu0 0.0
    %154 = vmatprep.subr.mxu0 0.0
    %155 = vmatpush1.xpose.msra.mxu0 0.0
    %156 = vmatprep.subr.mxu0 0.0
    %157 = vmatpush1.xpose.msra.mxu0 0.0
    %158 = vmatprep.subr.mxu0 0.0
    %159 = vmatpush1.xpose.msra.mxu0 0.0
    %160 = vmatprep.subr.mxu0 0.0
    %161 = vmatpush1.xpose.msra.mxu0 0.0
    %162 = vmatprep.subr.mxu0 0.0
    %163 = vmatpush1.xpose.msra.mxu0 0.0
    %164 = vmatprep.subr.mxu0 0.0
    %165 = vmatpush1.xpose.msra.mxu0 0.0
    %166 = vmatprep.subr.mxu0 0.0
    %167 = vmatpush1.xpose.msra.mxu0 0.0
    %168 = vmatprep.subr.mxu0 0.0
    %169 = vmatpush1.xpose.msra.mxu0 0.0
    %170 = vmatprep.subr.mxu0 0.0
    %171 = vmatpush1.xpose.msra.mxu0 0.0
    %172 = vmatprep.subr.mxu0 0.0
    %173 = vmatpush1.xpose.msra.mxu0 0.0
    %174 = vmatprep.subr.mxu0 0.0
    %175 = vmatpush1.xpose.msra.mxu0 0.0
    %176 = vmatprep.subr.mxu0 0.0
    %177 = vmatpush1.xpose.msra.mxu0 0.0
    %178 = vmatprep.subr.mxu0 0.0
    %179 = vmatpush1.xpose.msra.mxu0 0.0
    %180 = vmatprep.subr.mxu0 0.0
    %181 = vmatpush1.xpose.msra.mxu0 0.0
    %182 = vmatprep.subr.mxu0 0.0
    %183 = vmatpush1.xpose.msra.mxu0 0.0
    %184 = vmatprep.subr.mxu0 0.0
    %185 = vmatpush1.xpose.msra.mxu0 0.0
    %186 = vmatprep.subr.mxu0 0.0
    %187 = vmatpush1.xpose.msra.mxu0 0.0
    %188 = vmatprep.subr.mxu0 0.0
    %189 = vmatpush1.xpose.msra.mxu0 0.0
    %190 = vmatprep.subr.mxu0 0.0
    %191 = vmatpush1.xpose.msra.mxu0 0.0
    %192 = vmatprep.subr.mxu0 0.0
    %193 = vmatpush1.xpose.msra.mxu0 0.0
    %194 = vmatprep.subr.mxu0 0.0
    %195 = vmatpush1.xpose.msra.mxu0 0.0
    %196 = vmatprep.subr.mxu0 0.0
    %197 = vmatpush1.xpose.msra.mxu0 0.0
    %198 = vmatprep.subr.mxu0 0.0
    %199 = vmatpush1.xpose.msra.mxu0 0.0
    %200 = vmatprep.subr.mxu0 0.0
    %201 = vmatpush1.xpose.msra.mxu0 0.0
    %202 = vmatprep.subr.mxu0 0.0
    %203 = vmatpush1.xpose.msra.mxu0 0.0
    %204 = vmatprep.subr.mxu0 0.0
    %205 = vmatpush1.xpose.msra.mxu0 0.0
    %206 = vmatprep.mubr.f32.mxu0 0.0
    %207 = vmatmul.mubr.f32.gmra.mrb[0].mxu0 %v56
    %v208 = vpop.f32.mrb[0].mxu0
    %v209 = vadd.f32 0.0, %v208
    %v210 = vpop.f32.mrb[0].mxu0
    %211 = vmatprep.mubr.f32.mxu0 0.0
    %212 = vmatmul.mubr.f32.gmra.mrb[0].mxu0 %v59
    %v213 = vpop.f32.mrb[0].mxu0
    %v214 = vadd.f32 0.0, %v213
    %v215 = vpop.f32.mrb[0].mxu0
    %216 = vdwg.mxu0
    %v218 = vsel %vm54, %v37, 0
    %220 = vmatprep.subr.mxu0 0.0
    %221 = vmatpush1.xpose.msra.mxu0 %v218
    %222 = vmatprep.subr.mxu0 0.0
    %223 = vmatpush1.xpose.msra.mxu0 0.0
    %224 = vmatprep.subr.mxu0 0.0
    %225 = vmatpush1.xpose.msra.mxu0 0.0
    %226 = vmatprep.subr.mxu0 0.0
    %227 = vmatpush1.xpose.msra.mxu0 0.0
    %228 = vmatprep.subr.mxu0 0.0
    %229 = vmatpush1.xpose.msra.mxu0 0.0
    %230 = vmatprep.subr.mxu0 0.0
    %231 = vmatpush1.xpose.msra.mxu0 0.0
    %232 = vmatprep.subr.mxu0 0.0
    %233 = vmatpush1.xpose.msra.mxu0 0.0
    %234 = vmatprep.subr.mxu0 0.0
    %235 = vmatpush1.xpose.msra.mxu0 0.0
    %236 = vmatprep.subr.mxu0 0.0
    %237 = vmatpush1.xpose.msra.mxu0 0.0
    %238 = vmatprep.subr.mxu0 0.0
    %239 = vmatpush1.xpose.msra.mxu0 0.0
    %240 = vmatprep.subr.mxu0 0.0
    %241 = vmatpush1.xpose.msra.mxu0 0.0
    %242 = vmatprep.subr.mxu0 0.0
    %243 = vmatpush1.xpose.msra.mxu0 0.0
    %244 = vmatprep.subr.mxu0 0.0
    %245 = vmatpush1.xpose.msra.mxu0 0.0
    %246 = vmatprep.subr.mxu0 0.0
    %247 = vmatpush1.xpose.msra.mxu0 0.0
    %248 = vmatprep.subr.mxu0 0.0
    %249 = vmatpush1.xpose.msra.mxu0 0.0
    %250 = vmatprep.subr.mxu0 0.0
    %251 = vmatpush1.xpose.msra.mxu0 0.0
    %252 = vmatprep.subr.mxu0 0.0
    %253 = vmatpush1.xpose.msra.mxu0 0.0
    %254 = vmatprep.subr.mxu0 0.0
    %255 = vmatpush1.xpose.msra.mxu0 0.0
    %256 = vmatprep.subr.mxu0 0.0
    %257 = vmatpush1.xpose.msra.mxu0 0.0
    %258 = vmatprep.subr.mxu0 0.0
    %259 = vmatpush1.xpose.msra.mxu0 0.0
    %260 = vmatprep.subr.mxu0 0.0
    %261 = vmatpush1.xpose.msra.mxu0 0.0
    %262 = vmatprep.subr.mxu0 0.0
    %263 = vmatpush1.xpose.msra.mxu0 0.0
    %264 = vmatprep.subr.mxu0 0.0
    %265 = vmatpush1.xpose.msra.mxu0 0.0
    %266 = vmatprep.subr.mxu0 0.0
    %267 = vmatpush1.xpose.msra.mxu0 0.0
    %268 = vmatprep.subr.mxu0 0.0
    %269 = vmatpush1.xpose.msra.mxu0 0.0
    %270 = vmatprep.subr.mxu0 0.0
    %271 = vmatpush1.xpose.msra.mxu0 0.0
    %272 = vmatprep.subr.mxu0 0.0
    %273 = vmatpush1.xpose.msra.mxu0 0.0
    %274 = vmatprep.subr.mxu0 0.0
    %275 = vmatpush1.xpose.msra.mxu0 0.0
    %276 = vmatprep.subr.mxu0 0.0
    %277 = vmatpush1.xpose.msra.mxu0 0.0
    %278 = vmatprep.subr.mxu0 0.0
    %279 = vmatpush1.xpose.msra.mxu0 0.0
    %280 = vmatprep.subr.mxu0 0.0
    %281 = vmatpush1.xpose.msra.mxu0 0.0
    %282 = vmatprep.subr.mxu0 0.0
    %283 = vmatpush1.xpose.msra.mxu0 0.0
    %284 = vmatprep.mubr.f32.mxu0 0.0
    %285 = vmatmul.mubr.f32.gmra.mrb[0].mxu0 %v56
    %v286 = vpop.f32.mrb[0].mxu0
    %v287 = vadd.f32 0.0, %v286
    %v288 = vpop.f32.mrb[0].mxu0
    %289 = vmatprep.mubr.f32.mxu0 0.0
    %290 = vmatmul.mubr.f32.gmra.mrb[0].mxu0 %v59
    %v291 = vpop.f32.mrb[0].mxu0
    %v292 = vadd.f32 0.0, %v291
    %v293 = vpop.f32.mrb[0].mxu0
    %294 = vdwg.mxu0
    %v296 = vsel %vm54, %v38, 0
    %298 = vmatprep.subr.mxu0 0.0
    %299 = vmatpush1.xpose.msra.mxu0 %v296
    %300 = vmatprep.subr.mxu0 0.0
    %301 = vmatpush1.xpose.msra.mxu0 0.0
    %302 = vmatprep.subr.mxu0 0.0
    %303 = vmatpush1.xpose.msra.mxu0 0.0
    %304 = vmatprep.subr.mxu0 0.0
    %305 = vmatpush1.xpose.msra.mxu0 0.0
    %306 = vmatprep.subr.mxu0 0.0
    %307 = vmatpush1.xpose.msra.mxu0 0.0
    %308 = vmatprep.subr.mxu0 0.0
    %309 = vmatpush1.xpose.msra.mxu0 0.0
    %310 = vmatprep.subr.mxu0 0.0
    %311 = vmatpush1.xpose.msra.mxu0 0.0
    %312 = vmatprep.subr.mxu0 0.0
    %313 = vmatpush1.xpose.msra.mxu0 0.0
    %314 = vmatprep.subr.mxu0 0.0
    %315 = vmatpush1.xpose.msra.mxu0 0.0
    %316 = vmatprep.subr.mxu0 0.0
    %317 = vmatpush1.xpose.msra.mxu0 0.0
    %318 = vmatprep.subr.mxu0 0.0
    %319 = vmatpush1.xpose.msra.mxu0 0.0
    %320 = vmatprep.subr.mxu0 0.0
    %321 = vmatpush1.xpose.msra.mxu0 0.0
    %322 = vmatprep.subr.mxu0 0.0
    %323 = vmatpush1.xpose.msra.mxu0 0.0
    %324 = vmatprep.subr.mxu0 0.0
    %325 = vmatpush1.xpose.msra.mxu0 0.0
    %326 = vmatprep.subr.mxu0 0.0
    %327 = vmatpush1.xpose.msra.mxu0 0.0
    %328 = vmatprep.subr.mxu0 0.0
    %329 = vmatpush1.xpose.msra.mxu0 0.0
    %330 = vmatprep.subr.mxu0 0.0
    %331 = vmatpush1.xpose.msra.mxu0 0.0
    %332 = vmatprep.subr.mxu0 0.0
    %333 = vmatpush1.xpose.msra.mxu0 0.0
    %334 = vmatprep.subr.mxu0 0.0
    %335 = vmatpush1.xpose.msra.mxu0 0.0
    %336 = vmatprep.subr.mxu0 0.0
    %337 = vmatpush1.xpose.msra.mxu0 0.0
    %338 = vmatprep.subr.mxu0 0.0
    %339 = vmatpush1.xpose.msra.mxu0 0.0
    %340 = vmatprep.subr.mxu0 0.0
    %341 = vmatpush1.xpose.msra.mxu0 0.0
    %342 = vmatprep.subr.mxu0 0.0
    %343 = vmatpush1.xpose.msra.mxu0 0.0
    %344 = vmatprep.subr.mxu0 0.0
    %345 = vmatpush1.xpose.msra.mxu0 0.0
    %346 = vmatprep.subr.mxu0 0.0
    %347 = vmatpush1.xpose.msra.mxu0 0.0
    %348 = vmatprep.subr.mxu0 0.0
    %349 = vmatpush1.xpose.msra.mxu0 0.0
    %350 = vmatprep.subr.mxu0 0.0
    %351 = vmatpush1.xpose.msra.mxu0 0.0
    %352 = vmatprep.subr.mxu0 0.0
    %353 = vmatpush1.xpose.msra.mxu0 0.0
    %354 = vmatprep.subr.mxu0 0.0
    %355 = vmatpush1.xpose.msra.mxu0 0.0
    %356 = vmatprep.subr.mxu0 0.0
    %357 = vmatpush1.xpose.msra.mxu0 0.0
    %358 = vmatprep.subr.mxu0 0.0
    %359 = vmatpush1.xpose.msra.mxu0 0.0
    %360 = vmatprep.subr.mxu0 0.0
    %361 = vmatpush1.xpose.msra.mxu0 0.0
    %362 = vmatprep.mubr.f32.mxu0 0.0
    %363 = vmatmul.mubr.f32.gmra.mrb[0].mxu0 %v56
    %v364 = vpop.f32.mrb[0].mxu0
    %v365 = vadd.f32 0.0, %v364
    %v366 = vpop.f32.mrb[0].mxu0
    %367 = vmatprep.mubr.f32.mxu0 0.0
    %368 = vmatmul.mubr.f32.gmra.mrb[0].mxu0 %v59
    %v369 = vpop.f32.mrb[0].mxu0
    %v370 = vadd.f32 0.0, %v369
    %v371 = vpop.f32.mrb[0].mxu0
    %372 = vdwg.mxu0
    %v373 = vmul.f32 %v131, 0.35355338
    %v374 = vmul.f32 %v136, 0.35355338
    %v375 = vmul.f32 %v209, 0.35355338
    %v376 = vmul.f32 %v214, 0.35355338
    %v377 = vmul.f32 %v287, 0.35355338
    %v378 = vmul.f32 %v292, 0.35355338
    %v379 = vmul.f32 %v365, 0.35355338
    %v380 = vmul.f32 %v370, 0.35355338
    %v382 = vsel %vm54, %v31, 0
    %v385 = vsel %vm54, %v32, 0
    %v388 = vsel %vm54, %v40, 0
    %390 = vmatprep.subr.mxu0 0.0
    %391 = vmatpush1.xpose.msra.mxu0 %v388
    %392 = vmatprep.subr.mxu0 0.0
    %393 = vmatpush1.xpose.msra.mxu0 0.0
    %394 = vmatprep.subr.mxu0 0.0
    %395 = vmatpush1.xpose.msra.mxu0 0.0
    %396 = vmatprep.subr.mxu0 0.0
    %397 = vmatpush1.xpose.msra.mxu0 0.0
    %398 = vmatprep.subr.mxu0 0.0
    %399 = vmatpush1.xpose.msra.mxu0 0.0
    %400 = vmatprep.subr.mxu0 0.0
    %401 = vmatpush1.xpose.msra.mxu0 0.0
    %402 = vmatprep.subr.mxu0 0.0
    %403 = vmatpush1.xpose.msra.mxu0 0.0
    %404 = vmatprep.subr.mxu0 0.0
    %405 = vmatpush1.xpose.msra.mxu0 0.0
    %406 = vmatprep.subr.mxu0 0.0
    %407 = vmatpush1.xpose.msra.mxu0 0.0
    %408 = vmatprep.subr.mxu0 0.0
    %409 = vmatpush1.xpose.msra.mxu0 0.0
    %410 = vmatprep.subr.mxu0 0.0
    %411 = vmatpush1.xpose.msra.mxu0 0.0
    %412 = vmatprep.subr.mxu0 0.0
    %413 = vmatpush1.xpose.msra.mxu0 0.0
    %414 = vmatprep.subr.mxu0 0.0
    %415 = vmatpush1.xpose.msra.mxu0 0.0
    %416 = vmatprep.subr.mxu0 0.0
    %417 = vmatpush1.xpose.msra.mxu0 0.0
    %418 = vmatprep.subr.mxu0 0.0
    %419 = vmatpush1.xpose.msra.mxu0 0.0
    %420 = vmatprep.subr.mxu0 0.0
    %421 = vmatpush1.xpose.msra.mxu0 0.0
    %422 = vmatprep.subr.mxu0 0.0
    %423 = vmatpush1.xpose.msra.mxu0 0.0
    %424 = vmatprep.subr.mxu0 0.0
    %425 = vmatpush1.xpose.msra.mxu0 0.0
    %426 = vmatprep.subr.mxu0 0.0
    %427 = vmatpush1.xpose.msra.mxu0 0.0
    %428 = vmatprep.subr.mxu0 0.0
    %429 = vmatpush1.xpose.msra.mxu0 0.0
    %430 = vmatprep.subr.mxu0 0.0
    %431 = vmatpush1.xpose.msra.mxu0 0.0
    %432 = vmatprep.subr.mxu0 0.0
    %433 = vmatpush1.xpose.msra.mxu0 0.0
    %434 = vmatprep.subr.mxu0 0.0
    %435 = vmatpush1.xpose.msra.mxu0 0.0
    %436 = vmatprep.subr.mxu0 0.0
    %437 = vmatpush1.xpose.msra.mxu0 0.0
    %438 = vmatprep.subr.mxu0 0.0
    %439 = vmatpush1.xpose.msra.mxu0 0.0
    %440 = vmatprep.subr.mxu0 0.0
    %441 = vmatpush1.xpose.msra.mxu0 0.0
    %442 = vmatprep.subr.mxu0 0.0
    %443 = vmatpush1.xpose.msra.mxu0 0.0
    %444 = vmatprep.subr.mxu0 0.0
    %445 = vmatpush1.xpose.msra.mxu0 0.0
    %446 = vmatprep.subr.mxu0 0.0
    %447 = vmatpush1.xpose.msra.mxu0 0.0
    %448 = vmatprep.subr.mxu0 0.0
    %449 = vmatpush1.xpose.msra.mxu0 0.0
    %450 = vmatprep.subr.mxu0 0.0
    %451 = vmatpush1.xpose.msra.mxu0 0.0
    %452 = vmatprep.subr.mxu0 0.0
    %453 = vmatpush1.xpose.msra.mxu0 0.0
    %454 = vmatprep.mubr.f32.mxu0 0.0
    %455 = vmatmul.mubr.f32.gmra.mrb[0].mxu0 %v382
    %v456 = vpop.f32.mrb[0].mxu0
    %v457 = vadd.f32 0.0, %v456
    %v458 = vpop.f32.mrb[0].mxu0
    %459 = vmatprep.mubr.f32.mxu0 0.0
    %460 = vmatmul.mubr.f32.gmra.mrb[0].mxu0 %v385
    %v461 = vpop.f32.mrb[0].mxu0
    %v462 = vadd.f32 0.0, %v461
    %v463 = vpop.f32.mrb[0].mxu0
    %464 = vdwg.mxu0
    %v466 = vsel %vm54, %v41, 0
    %468 = vmatprep.subr.mxu0 0.0
    %469 = vmatpush1.xpose.msra.mxu0 %v466
    %470 = vmatprep.subr.mxu0 0.0
    %471 = vmatpush1.xpose.msra.mxu0 0.0
    %472 = vmatprep.subr.mxu0 0.0
    %473 = vmatpush1.xpose.msra.mxu0 0.0
    %474 = vmatprep.subr.mxu0 0.0
    %475 = vmatpush1.xpose.msra.mxu0 0.0
    %476 = vmatprep.subr.mxu0 0.0
    %477 = vmatpush1.xpose.msra.mxu0 0.0
    %478 = vmatprep.subr.mxu0 0.0
    %479 = vmatpush1.xpose.msra.mxu0 0.0
    %480 = vmatprep.subr.mxu0 0.0
    %481 = vmatpush1.xpose.msra.mxu0 0.0
    %482 = vmatprep.subr.mxu0 0.0
    %483 = vmatpush1.xpose.msra.mxu0 0.0
    %484 = vmatprep.subr.mxu0 0.0
    %485 = vmatpush1.xpose.msra.mxu0 0.0
    %486 = vmatprep.subr.mxu0 0.0
    %487 = vmatpush1.xpose.msra.mxu0 0.0
    %488 = vmatprep.subr.mxu0 0.0
    %489 = vmatpush1.xpose.msra.mxu0 0.0
    %490 = vmatprep.subr.mxu0 0.0
    %491 = vmatpush1.xpose.msra.mxu0 0.0
    %492 = vmatprep.subr.mxu0 0.0
    %493 = vmatpush1.xpose.msra.mxu0 0.0
    %494 = vmatprep.subr.mxu0 0.0
    %495 = vmatpush1.xpose.msra.mxu0 0.0
    %496 = vmatprep.subr.mxu0 0.0
    %497 = vmatpush1.xpose.msra.mxu0 0.0
    %498 = vmatprep.subr.mxu0 0.0
    %499 = vmatpush1.xpose.msra.mxu0 0.0
    %500 = vmatprep.subr.mxu0 0.0
    %501 = vmatpush1.xpose.msra.mxu0 0.0
    %502 = vmatprep.subr.mxu0 0.0
    %503 = vmatpush1.xpose.msra.mxu0 0.0
    %504 = vmatprep.subr.mxu0 0.0
    %505 = vmatpush1.xpose.msra.mxu0 0.0
    %506 = vmatprep.subr.mxu0 0.0
    %507 = vmatpush1.xpose.msra.mxu0 0.0
    %508 = vmatprep.subr.mxu0 0.0
    %509 = vmatpush1.xpose.msra.mxu0 0.0
    %510 = vmatprep.subr.mxu0 0.0
    %511 = vmatpush1.xpose.msra.mxu0 0.0
    %512 = vmatprep.subr.mxu0 0.0
    %513 = vmatpush1.xpose.msra.mxu0 0.0
    %514 = vmatprep.subr.mxu0 0.0
    %515 = vmatpush1.xpose.msra.mxu0 0.0
    %516 = vmatprep.subr.mxu0 0.0
    %517 = vmatpush1.xpose.msra.mxu0 0.0
    %518 = vmatprep.subr.mxu0 0.0
    %519 = vmatpush1.xpose.msra.mxu0 0.0
    %520 = vmatprep.subr.mxu0 0.0
    %521 = vmatpush1.xpose.msra.mxu0 0.0
    %522 = vmatprep.subr.mxu0 0.0
    %523 = vmatpush1.xpose.msra.mxu0 0.0
    %524 = vmatprep.subr.mxu0 0.0
    %525 = vmatpush1.xpose.msra.mxu0 0.0
    %526 = vmatprep.subr.mxu0 0.0
    %527 = vmatpush1.xpose.msra.mxu0 0.0
    %528 = vmatprep.subr.mxu0 0.0
    %529 = vmatpush1.xpose.msra.mxu0 0.0
    %530 = vmatprep.subr.mxu0 0.0
    %531 = vmatpush1.xpose.msra.mxu0 0.0
    %532 = vmatprep.mubr.f32.mxu0 0.0
    %533 = vmatmul.mubr.f32.gmra.mrb[0].mxu0 %v382
    %v534 = vpop.f32.mrb[0].mxu0
    %v535 = vadd.f32 0.0, %v534
    %v536 = vpop.f32.mrb[0].mxu0
    %537 = vmatprep.mubr.f32.mxu0 0.0
    %538 = vmatmul.mubr.f32.gmra.mrb[0].mxu0 %v385
    %v539 = vpop.f32.mrb[0].mxu0
    %v540 = vadd.f32 0.0, %v539
    %v541 = vpop.f32.mrb[0].mxu0
    %542 = vdwg.mxu0
    %v544 = vsel %vm54, %v42, 0
    %546 = vmatprep.subr.mxu0 0.0
    %547 = vmatpush1.xpose.msra.mxu0 %v544
    %548 = vmatprep.subr.mxu0 0.0
    %549 = vmatpush1.xpose.msra.mxu0 0.0
    %550 = vmatprep.subr.mxu0 0.0
    %551 = vmatpush1.xpose.msra.mxu0 0.0
    %552 = vmatprep.subr.mxu0 0.0
    %553 = vmatpush1.xpose.msra.mxu0 0.0
    %554 = vmatprep.subr.mxu0 0.0
    %555 = vmatpush1.xpose.msra.mxu0 0.0
    %556 = vmatprep.subr.mxu0 0.0
    %557 = vmatpush1.xpose.msra.mxu0 0.0
    %558 = vmatprep.subr.mxu0 0.0
    %559 = vmatpush1.xpose.msra.mxu0 0.0
    %560 = vmatprep.subr.mxu0 0.0
    %561 = vmatpush1.xpose.msra.mxu0 0.0
    %562 = vmatprep.subr.mxu0 0.0
    %563 = vmatpush1.xpose.msra.mxu0 0.0
    %564 = vmatprep.subr.mxu0 0.0
    %565 = vmatpush1.xpose.msra.mxu0 0.0
    %566 = vmatprep.subr.mxu0 0.0
    %567 = vmatpush1.xpose.msra.mxu0 0.0
    %568 = vmatprep.subr.mxu0 0.0
    %569 = vmatpush1.xpose.msra.mxu0 0.0
    %570 = vmatprep.subr.mxu0 0.0
    %571 = vmatpush1.xpose.msra.mxu0 0.0
    %572 = vmatprep.subr.mxu0 0.0
    %573 = vmatpush1.xpose.msra.mxu0 0.0
    %574 = vmatprep.subr.mxu0 0.0
    %575 = vmatpush1.xpose.msra.mxu0 0.0
    %576 = vmatprep.subr.mxu0 0.0
    %577 = vmatpush1.xpose.msra.mxu0 0.0
    %578 = vmatprep.subr.mxu0 0.0
    %579 = vmatpush1.xpose.msra.mxu0 0.0
    %580 = vmatprep.subr.mxu0 0.0
    %581 = vmatpush1.xpose.msra.mxu0 0.0
    %582 = vmatprep.subr.mxu0 0.0
    %583 = vmatpush1.xpose.msra.mxu0 0.0
    %584 = vmatprep.subr.mxu0 0.0
    %585 = vmatpush1.xpose.msra.mxu0 0.0
    %586 = vmatprep.subr.mxu0 0.0
    %587 = vmatpush1.xpose.msra.mxu0 0.0
    %588 = vmatprep.subr.mxu0 0.0
    %589 = vmatpush1.xpose.msra.mxu0 0.0
    %590 = vmatprep.subr.mxu0 0.0
    %591 = vmatpush1.xpose.msra.mxu0 0.0
    %592 = vmatprep.subr.mxu0 0.0
    %593 = vmatpush1.xpose.msra.mxu0 0.0
    %594 = vmatprep.subr.mxu0 0.0
    %595 = vmatpush1.xpose.msra.mxu0 0.0
    %596 = vmatprep.subr.mxu0 0.0
    %597 = vmatpush1.xpose.msra.mxu0 0.0
    %598 = vmatprep.subr.mxu0 0.0
    %599 = vmatpush1.xpose.msra.mxu0 0.0
    %600 = vmatprep.subr.mxu0 0.0
    %601 = vmatpush1.xpose.msra.mxu0 0.0
    %602 = vmatprep.subr.mxu0 0.0
    %603 = vmatpush1.xpose.msra.mxu0 0.0
    %604 = vmatprep.subr.mxu0 0.0
    %605 = vmatpush1.xpose.msra.mxu0 0.0
    %606 = vmatprep.subr.mxu0 0.0
    %607 = vmatpush1.xpose.msra.mxu0 0.0
    %608 = vmatprep.subr.mxu0 0.0
    %609 = vmatpush1.xpose.msra.mxu0 0.0
    %610 = vmatprep.mubr.f32.mxu0 0.0
    %611 = vmatmul.mubr.f32.gmra.mrb[0].mxu0 %v382
    %v612 = vpop.f32.mrb[0].mxu0
    %v613 = vadd.f32 0.0, %v612
    %v614 = vpop.f32.mrb[0].mxu0
    %615 = vmatprep.mubr.f32.mxu0 0.0
    %616 = vmatmul.mubr.f32.gmra.mrb[0].mxu0 %v385
    %v617 = vpop.f32.mrb[0].mxu0
    %v618 = vadd.f32 0.0, %v617
    %v619 = vpop.f32.mrb[0].mxu0
    %620 = vdwg.mxu0
    %v622 = vsel %vm54, %v43, 0
    %624 = vmatprep.subr.mxu0 0.0
    %625 = vmatpush1.xpose.msra.mxu0 %v622
    %626 = vmatprep.subr.mxu0 0.0
    %627 = vmatpush1.xpose.msra.mxu0 0.0
    %628 = vmatprep.subr.mxu0 0.0
    %629 = vmatpush1.xpose.msra.mxu0 0.0
    %630 = vmatprep.subr.mxu0 0.0
    %631 = vmatpush1.xpose.msra.mxu0 0.0
    %632 = vmatprep.subr.mxu0 0.0
    %633 = vmatpush1.xpose.msra.mxu0 0.0
    %634 = vmatprep.subr.mxu0 0.0
    %635 = vmatpush1.xpose.msra.mxu0 0.0
    %636 = vmatprep.subr.mxu0 0.0
    %637 = vmatpush1.xpose.msra.mxu0 0.0
    %638 = vmatprep.subr.mxu0 0.0
    %639 = vmatpush1.xpose.msra.mxu0 0.0
    %640 = vmatprep.subr.mxu0 0.0
    %641 = vmatpush1.xpose.msra.mxu0 0.0
    %642 = vmatprep.subr.mxu0 0.0
    %643 = vmatpush1.xpose.msra.mxu0 0.0
    %644 = vmatprep.subr.mxu0 0.0
    %645 = vmatpush1.xpose.msra.mxu0 0.0
    %646 = vmatprep.subr.mxu0 0.0
    %647 = vmatpush1.xpose.msra.mxu0 0.0
    %648 = vmatprep.subr.mxu0 0.0
    %649 = vmatpush1.xpose.msra.mxu0 0.0
    %650 = vmatprep.subr.mxu0 0.0
    %651 = vmatpush1.xpose.msra.mxu0 0.0
    %652 = vmatprep.subr.mxu0 0.0
    %653 = vmatpush1.xpose.msra.mxu0 0.0
    %654 = vmatprep.subr.mxu0 0.0
    %655 = vmatpush1.xpose.msra.mxu0 0.0
    %656 = vmatprep.subr.mxu0 0.0
    %657 = vmatpush1.xpose.msra.mxu0 0.0
    %658 = vmatprep.subr.mxu0 0.0
    %659 = vmatpush1.xpose.msra.mxu0 0.0
    %660 = vmatprep.subr.mxu0 0.0
    %661 = vmatpush1.xpose.msra.mxu0 0.0
    %662 = vmatprep.subr.mxu0 0.0
    %663 = vmatpush1.xpose.msra.mxu0 0.0
    %664 = vmatprep.subr.mxu0 0.0
    %665 = vmatpush1.xpose.msra.mxu0 0.0
    %666 = vmatprep.subr.mxu0 0.0
    %667 = vmatpush1.xpose.msra.mxu0 0.0
    %668 = vmatprep.subr.mxu0 0.0
    %669 = vmatpush1.xpose.msra.mxu0 0.0
    %670 = vmatprep.subr.mxu0 0.0
    %671 = vmatpush1.xpose.msra.mxu0 0.0
    %672 = vmatprep.subr.mxu0 0.0
    %673 = vmatpush1.xpose.msra.mxu0 0.0
    %674 = vmatprep.subr.mxu0 0.0
    %675 = vmatpush1.xpose.msra.mxu0 0.0
    %676 = vmatprep.subr.mxu0 0.0
    %677 = vmatpush1.xpose.msra.mxu0 0.0
    %678 = vmatprep.subr.mxu0 0.0
    %679 = vmatpush1.xpose.msra.mxu0 0.0
    %680 = vmatprep.subr.mxu0 0.0
    %681 = vmatpush1.xpose.msra.mxu0 0.0
    %682 = vmatprep.subr.mxu0 0.0
    %683 = vmatpush1.xpose.msra.mxu0 0.0
    %684 = vmatprep.subr.mxu0 0.0
    %685 = vmatpush1.xpose.msra.mxu0 0.0
    %686 = vmatprep.subr.mxu0 0.0
    %687 = vmatpush1.xpose.msra.mxu0 0.0
    %688 = vmatprep.mubr.f32.mxu0 0.0
    %689 = vmatmul.mubr.f32.gmra.mrb[0].mxu0 %v382
    %v690 = vpop.f32.mrb[0].mxu0
    %v691 = vadd.f32 0.0, %v690
    %v692 = vpop.f32.mrb[0].mxu0
    %693 = vmatprep.mubr.f32.mxu0 0.0
    %694 = vmatmul.mubr.f32.gmra.mrb[0].mxu0 %v385
    %v695 = vpop.f32.mrb[0].mxu0
    %v696 = vadd.f32 0.0, %v695
    %v697 = vpop.f32.mrb[0].mxu0
    %698 = vdwg.mxu0
    %v700 = vsel %vm54, %v33, 0
    %v703 = vsel %vm54, %v34, 0
    %v706 = vsel %vm54, %v45, 0
    %708 = vmatprep.subr.mxu0 0.0
    %709 = vmatpush1.xpose.msra.mxu0 %v706
    %710 = vmatprep.subr.mxu0 0.0
    %711 = vmatpush1.xpose.msra.mxu0 0.0
    %712 = vmatprep.subr.mxu0 0.0
    %713 = vmatpush1.xpose.msra.mxu0 0.0
    %714 = vmatprep.subr.mxu0 0.0
    %715 = vmatpush1.xpose.msra.mxu0 0.0
    %716 = vmatprep.subr.mxu0 0.0
    %717 = vmatpush1.xpose.msra.mxu0 0.0
    %718 = vmatprep.subr.mxu0 0.0
    %719 = vmatpush1.xpose.msra.mxu0 0.0
    %720 = vmatprep.subr.mxu0 0.0
    %721 = vmatpush1.xpose.msra.mxu0 0.0
    %722 = vmatprep.subr.mxu0 0.0
    %723 = vmatpush1.xpose.msra.mxu0 0.0
    %724 = vmatprep.subr.mxu0 0.0
    %725 = vmatpush1.xpose.msra.mxu0 0.0
    %726 = vmatprep.subr.mxu0 0.0
    %727 = vmatpush1.xpose.msra.mxu0 0.0
    %728 = vmatprep.subr.mxu0 0.0
    %729 = vmatpush1.xpose.msra.mxu0 0.0
    %730 = vmatprep.subr.mxu0 0.0
    %731 = vmatpush1.xpose.msra.mxu0 0.0
    %732 = vmatprep.subr.mxu0 0.0
    %733 = vmatpush1.xpose.msra.mxu0 0.0
    %734 = vmatprep.subr.mxu0 0.0
    %735 = vmatpush1.xpose.msra.mxu0 0.0
    %736 = vmatprep.subr.mxu0 0.0
    %737 = vmatpush1.xpose.msra.mxu0 0.0
    %738 = vmatprep.subr.mxu0 0.0
    %739 = vmatpush1.xpose.msra.mxu0 0.0
    %740 = vmatprep.subr.mxu0 0.0
    %741 = vmatpush1.xpose.msra.mxu0 0.0
    %742 = vmatprep.subr.mxu0 0.0
    %743 = vmatpush1.xpose.msra.mxu0 0.0
    %744 = vmatprep.subr.mxu0 0.0
    %745 = vmatpush1.xpose.msra.mxu0 0.0
    %746 = vmatprep.subr.mxu0 0.0
    %747 = vmatpush1.xpose.msra.mxu0 0.0
    %748 = vmatprep.subr.mxu0 0.0
    %749 = vmatpush1.xpose.msra.mxu0 0.0
    %750 = vmatprep.subr.mxu0 0.0
    %751 = vmatpush1.xpose.msra.mxu0 0.0
    %752 = vmatprep.subr.mxu0 0.0
    %753 = vmatpush1.xpose.msra.mxu0 0.0
    %754 = vmatprep.subr.mxu0 0.0
    %755 = vmatpush1.xpose.msra.mxu0 0.0
    %756 = vmatprep.subr.mxu0 0.0
    %757 = vmatpush1.xpose.msra.mxu0 0.0
    %758 = vmatprep.subr.mxu0 0.0
    %759 = vmatpush1.xpose.msra.mxu0 0.0
    %760 = vmatprep.subr.mxu0 0.0
    %761 = vmatpush1.xpose.msra.mxu0 0.0
    %762 = vmatprep.subr.mxu0 0.0
    %763 = vmatpush1.xpose.msra.mxu0 0.0
    %764 = vmatprep.subr.mxu0 0.0
    %765 = vmatpush1.xpose.msra.mxu0 0.0
    %766 = vmatprep.subr.mxu0 0.0
    %767 = vmatpush1.xpose.msra.mxu0 0.0
    %768 = vmatprep.subr.mxu0 0.0
    %769 = vmatpush1.xpose.msra.mxu0 0.0
    %770 = vmatprep.subr.mxu0 0.0
    %771 = vmatpush1.xpose.msra.mxu0 0.0
    %772 = vmatprep.mubr.f32.mxu0 0.0
    %773 = vmatmul.mubr.f32.gmra.mrb[0].mxu0 %v700
    %v774 = vpop.f32.mrb[0].mxu0
    %v775 = vadd.f32 0.0, %v774
    %v776 = vpop.f32.mrb[0].mxu0
    %777 = vmatprep.mubr.f32.mxu0 0.0
    %778 = vmatmul.mubr.f32.gmra.mrb[0].mxu0 %v703
    %v779 = vpop.f32.mrb[0].mxu0
    %v780 = vadd.f32 0.0, %v779
    %v781 = vpop.f32.mrb[0].mxu0
    %782 = vdwg.mxu0
    %v784 = vsel %vm54, %v46, 0
    %786 = vmatprep.subr.mxu0 0.0
    %787 = vmatpush1.xpose.msra.mxu0 %v784
    %788 = vmatprep.subr.mxu0 0.0
    %789 = vmatpush1.xpose.msra.mxu0 0.0
    %790 = vmatprep.subr.mxu0 0.0
    %791 = vmatpush1.xpose.msra.mxu0 0.0
    %792 = vmatprep.subr.mxu0 0.0
    %793 = vmatpush1.xpose.msra.mxu0 0.0
    %794 = vmatprep.subr.mxu0 0.0
    %795 = vmatpush1.xpose.msra.mxu0 0.0
    %796 = vmatprep.subr.mxu0 0.0
    %797 = vmatpush1.xpose.msra.mxu0 0.0
    %798 = vmatprep.subr.mxu0 0.0
    %799 = vmatpush1.xpose.msra.mxu0 0.0
    %800 = vmatprep.subr.mxu0 0.0
    %801 = vmatpush1.xpose.msra.mxu0 0.0
    %802 = vmatprep.subr.mxu0 0.0
    %803 = vmatpush1.xpose.msra.mxu0 0.0
    %804 = vmatprep.subr.mxu0 0.0
    %805 = vmatpush1.xpose.msra.mxu0 0.0
    %806 = vmatprep.subr.mxu0 0.0
    %807 = vmatpush1.xpose.msra.mxu0 0.0
    %808 = vmatprep.subr.mxu0 0.0
    %809 = vmatpush1.xpose.msra.mxu0 0.0
    %810 = vmatprep.subr.mxu0 0.0
    %811 = vmatpush1.xpose.msra.mxu0 0.0
    %812 = vmatprep.subr.mxu0 0.0
    %813 = vmatpush1.xpose.msra.mxu0 0.0
    %814 = vmatprep.subr.mxu0 0.0
    %815 = vmatpush1.xpose.msra.mxu0 0.0
    %816 = vmatprep.subr.mxu0 0.0
    %817 = vmatpush1.xpose.msra.mxu0 0.0
    %818 = vmatprep.subr.mxu0 0.0
    %819 = vmatpush1.xpose.msra.mxu0 0.0
    %820 = vmatprep.subr.mxu0 0.0
    %821 = vmatpush1.xpose.msra.mxu0 0.0
    %822 = vmatprep.subr.mxu0 0.0
    %823 = vmatpush1.xpose.msra.mxu0 0.0
    %824 = vmatprep.subr.mxu0 0.0
    %825 = vmatpush1.xpose.msra.mxu0 0.0
    %826 = vmatprep.subr.mxu0 0.0
    %827 = vmatpush1.xpose.msra.mxu0 0.0
    %828 = vmatprep.subr.mxu0 0.0
    %829 = vmatpush1.xpose.msra.mxu0 0.0
    %830 = vmatprep.subr.mxu0 0.0
    %831 = vmatpush1.xpose.msra.mxu0 0.0
    %832 = vmatprep.subr.mxu0 0.0
    %833 = vmatpush1.xpose.msra.mxu0 0.0
    %834 = vmatprep.subr.mxu0 0.0
    %835 = vmatpush1.xpose.msra.mxu0 0.0
    %836 = vmatprep.subr.mxu0 0.0
    %837 = vmatpush1.xpose.msra.mxu0 0.0
    %838 = vmatprep.subr.mxu0 0.0
    %839 = vmatpush1.xpose.msra.mxu0 0.0
    %840 = vmatprep.subr.mxu0 0.0
    %841 = vmatpush1.xpose.msra.mxu0 0.0
    %842 = vmatprep.subr.mxu0 0.0
    %843 = vmatpush1.xpose.msra.mxu0 0.0
    %844 = vmatprep.subr.mxu0 0.0
    %845 = vmatpush1.xpose.msra.mxu0 0.0
    %846 = vmatprep.subr.mxu0 0.0
    %847 = vmatpush1.xpose.msra.mxu0 0.0
    %848 = vmatprep.subr.mxu0 0.0
    %849 = vmatpush1.xpose.msra.mxu0 0.0
    %850 = vmatprep.mubr.f32.mxu0 0.0
    %851 = vmatmul.mubr.f32.gmra.mrb[0].mxu0 %v700
    %v852 = vpop.f32.mrb[0].mxu0
    %v853 = vadd.f32 0.0, %v852
    %v854 = vpop.f32.mrb[0].mxu0
    %855 = vmatprep.mubr.f32.mxu0 0.0
    %856 = vmatmul.mubr.f32.gmra.mrb[0].mxu0 %v703
    %v857 = vpop.f32.mrb[0].mxu0
    %v858 = vadd.f32 0.0, %v857
    %v859 = vpop.f32.mrb[0].mxu0
    %860 = vdwg.mxu0
    %v862 = vsel %vm54, %v47, 0
    %864 = vmatprep.subr.mxu0 0.0
    %865 = vmatpush1.xpose.msra.mxu0 %v862
    %866 = vmatprep.subr.mxu0 0.0
    %867 = vmatpush1.xpose.msra.mxu0 0.0
    %868 = vmatprep.subr.mxu0 0.0
    %869 = vmatpush1.xpose.msra.mxu0 0.0
    %870 = vmatprep.subr.mxu0 0.0
    %871 = vmatpush1.xpose.msra.mxu0 0.0
    %872 = vmatprep.subr.mxu0 0.0
    %873 = vmatpush1.xpose.msra.mxu0 0.0
    %874 = vmatprep.subr.mxu0 0.0
    %875 = vmatpush1.xpose.msra.mxu0 0.0
    %876 = vmatprep.subr.mxu0 0.0
    %877 = vmatpush1.xpose.msra.mxu0 0.0
    %878 = vmatprep.subr.mxu0 0.0
    %879 = vmatpush1.xpose.msra.mxu0 0.0
    %880 = vmatprep.subr.mxu0 0.0
    %881 = vmatpush1.xpose.msra.mxu0 0.0
    %882 = vmatprep.subr.mxu0 0.0
    %883 = vmatpush1.xpose.msra.mxu0 0.0
    %884 = vmatprep.subr.mxu0 0.0
    %885 = vmatpush1.xpose.msra.mxu0 0.0
    %886 = vmatprep.subr.mxu0 0.0
    %887 = vmatpush1.xpose.msra.mxu0 0.0
    %888 = vmatprep.subr.mxu0 0.0
    %889 = vmatpush1.xpose.msra.mxu0 0.0
    %890 = vmatprep.subr.mxu0 0.0
    %891 = vmatpush1.xpose.msra.mxu0 0.0
    %892 = vmatprep.subr.mxu0 0.0
    %893 = vmatpush1.xpose.msra.mxu0 0.0
    %894 = vmatprep.subr.mxu0 0.0
    %895 = vmatpush1.xpose.msra.mxu0 0.0
    %896 = vmatprep.subr.mxu0 0.0
    %897 = vmatpush1.xpose.msra.mxu0 0.0
    %898 = vmatprep.subr.mxu0 0.0
    %899 = vmatpush1.xpose.msra.mxu0 0.0
    %900 = vmatprep.subr.mxu0 0.0
    %901 = vmatpush1.xpose.msra.mxu0 0.0
    %902 = vmatprep.subr.mxu0 0.0
    %903 = vmatpush1.xpose.msra.mxu0 0.0
    %904 = vmatprep.subr.mxu0 0.0
    %905 = vmatpush1.xpose.msra.mxu0 0.0
    %906 = vmatprep.subr.mxu0 0.0
    %907 = vmatpush1.xpose.msra.mxu0 0.0
    %908 = vmatprep.subr.mxu0 0.0
    %909 = vmatpush1.xpose.msra.mxu0 0.0
    %910 = vmatprep.subr.mxu0 0.0
    %911 = vmatpush1.xpose.msra.mxu0 0.0
    %912 = vmatprep.subr.mxu0 0.0
    %913 = vmatpush1.xpose.msra.mxu0 0.0
    %914 = vmatprep.subr.mxu0 0.0
    %915 = vmatpush1.xpose.msra.mxu0 0.0
    %916 = vmatprep.subr.mxu0 0.0
    %917 = vmatpush1.xpose.msra.mxu0 0.0
    %918 = vmatprep.subr.mxu0 0.0
    %919 = vmatpush1.xpose.msra.mxu0 0.0
    %920 = vmatprep.subr.mxu0 0.0
    %921 = vmatpush1.xpose.msra.mxu0 0.0
    %922 = vmatprep.subr.mxu0 0.0
    %923 = vmatpush1.xpose.msra.mxu0 0.0
    %924 = vmatprep.subr.mxu0 0.0
    %925 = vmatpush1.xpose.msra.mxu0 0.0
    %926 = vmatprep.subr.mxu0 0.0
    %927 = vmatpush1.xpose.msra.mxu0 0.0
    %928 = vmatprep.mubr.f32.mxu0 0.0
    %929 = vmatmul.mubr.f32.gmra.mrb[0].mxu0 %v700
    %v930 = vpop.f32.mrb[0].mxu0
    %v931 = vadd.f32 0.0, %v930
    %v932 = vpop.f32.mrb[0].mxu0
    %933 = vmatprep.mubr.f32.mxu0 0.0
    %934 = vmatmul.mubr.f32.gmra.mrb[0].mxu0 %v703
    %v935 = vpop.f32.mrb[0].mxu0
    %v936 = vadd.f32 0.0, %v935
    %v937 = vpop.f32.mrb[0].mxu0
    %938 = vdwg.mxu0
    %v940 = vsel %vm54, %v48, 0
    %942 = vmatprep.subr.mxu0 0.0
    %943 = vmatpush1.xpose.msra.mxu0 %v940
    %944 = vmatprep.subr.mxu0 0.0
    %945 = vmatpush1.xpose.msra.mxu0 0.0
    %946 = vmatprep.subr.mxu0 0.0
    %947 = vmatpush1.xpose.msra.mxu0 0.0
    %948 = vmatprep.subr.mxu0 0.0
    %949 = vmatpush1.xpose.msra.mxu0 0.0
    %950 = vmatprep.subr.mxu0 0.0
    %951 = vmatpush1.xpose.msra.mxu0 0.0
    %952 = vmatprep.subr.mxu0 0.0
    %953 = vmatpush1.xpose.msra.mxu0 0.0
    %954 = vmatprep.subr.mxu0 0.0
    %955 = vmatpush1.xpose.msra.mxu0 0.0
    %956 = vmatprep.subr.mxu0 0.0
    %957 = vmatpush1.xpose.msra.mxu0 0.0
    %958 = vmatprep.subr.mxu0 0.0
    %959 = vmatpush1.xpose.msra.mxu0 0.0
    %960 = vmatprep.subr.mxu0 0.0
    %961 = vmatpush1.xpose.msra.mxu0 0.0
    %962 = vmatprep.subr.mxu0 0.0
    %963 = vmatpush1.xpose.msra.mxu0 0.0
    %964 = vmatprep.subr.mxu0 0.0
    %965 = vmatpush1.xpose.msra.mxu0 0.0
    %966 = vmatprep.subr.mxu0 0.0
    %967 = vmatpush1.xpose.msra.mxu0 0.0
    %968 = vmatprep.subr.mxu0 0.0
    %969 = vmatpush1.xpose.msra.mxu0 0.0
    %970 = vmatprep.subr.mxu0 0.0
    %971 = vmatpush1.xpose.msra.mxu0 0.0
    %972 = vmatprep.subr.mxu0 0.0
    %973 = vmatpush1.xpose.msra.mxu0 0.0
    %974 = vmatprep.subr.mxu0 0.0
    %975 = vmatpush1.xpose.msra.mxu0 0.0
    %976 = vmatprep.subr.mxu0 0.0
    %977 = vmatpush1.xpose.msra.mxu0 0.0
    %978 = vmatprep.subr.mxu0 0.0
    %979 = vmatpush1.xpose.msra.mxu0 0.0
    %980 = vmatprep.subr.mxu0 0.0
    %981 = vmatpush1.xpose.msra.mxu0 0.0
    %982 = vmatprep.subr.mxu0 0.0
    %983 = vmatpush1.xpose.msra.mxu0 0.0
    %984 = vmatprep.subr.mxu0 0.0
    %985 = vmatpush1.xpose.msra.mxu0 0.0
    %986 = vmatprep.subr.mxu0 0.0
    %987 = vmatpush1.xpose.msra.mxu0 0.0
    %988 = vmatprep.subr.mxu0 0.0
    %989 = vmatpush1.xpose.msra.mxu0 0.0
    %990 = vmatprep.subr.mxu0 0.0
    %991 = vmatpush1.xpose.msra.mxu0 0.0
    %992 = vmatprep.subr.mxu0 0.0
    %993 = vmatpush1.xpose.msra.mxu0 0.0
    %994 = vmatprep.subr.mxu0 0.0
    %995 = vmatpush1.xpose.msra.mxu0 0.0
    %996 = vmatprep.subr.mxu0 0.0
    %997 = vmatpush1.xpose.msra.mxu0 0.0
    %998 = vmatprep.subr.mxu0 0.0
    %999 = vmatpush1.xpose.msra.mxu0 0.0
    %1000 = vmatprep.subr.mxu0 0.0
    %1001 = vmatpush1.xpose.msra.mxu0 0.0
    %1002 = vmatprep.subr.mxu0 0.0
    %1003 = vmatpush1.xpose.msra.mxu0 0.0
    %1004 = vmatprep.subr.mxu0 0.0
    %1005 = vmatpush1.xpose.msra.mxu0 0.0
    %1006 = vmatprep.mubr.f32.mxu0 0.0
    %1007 = vmatmul.mubr.f32.gmra.mrb[0].mxu0 %v700
    %v1008 = vpop.f32.mrb[0].mxu0
    %v1009 = vadd.f32 0.0, %v1008
    %v1010 = vpop.f32.mrb[0].mxu0
    %1011 = vmatprep.mubr.f32.mxu0 0.0
    %1012 = vmatmul.mubr.f32.gmra.mrb[0].mxu0 %v703
    %v1013 = vpop.f32.mrb[0].mxu0
    %v1014 = vadd.f32 0.0, %v1013
    %v1015 = vpop.f32.mrb[0].mxu0
    %1016 = vdwg.mxu0
    %vm1017 = vcmask 64512
    %v1019 = vsel %vm1017, %v373, 0
    %v1022 = vsel %vm1017, %v457, 0
    %1024 = vmatprep.subr.mxu0 0.0
    %1025 = vmatpush1.xpose.msra.mxu0 %v1022
    %1026 = vmatprep.subr.mxu0 0.0
    %1027 = vmatpush1.xpose.msra.mxu0 0.0
    %1028 = vmatprep.subr.mxu0 0.0
    %1029 = vmatpush1.xpose.msra.mxu0 0.0
    %1030 = vmatprep.subr.mxu0 0.0
    %1031 = vmatpush1.xpose.msra.mxu0 0.0
    %1032 = vmatprep.subr.mxu0 0.0
    %1033 = vmatpush1.xpose.msra.mxu0 0.0
    %1034 = vmatprep.subr.mxu0 0.0
    %1035 = vmatpush1.xpose.msra.mxu0 0.0
    %1036 = vmatprep.subr.mxu0 0.0
    %1037 = vmatpush1.xpose.msra.mxu0 0.0
    %1038 = vmatprep.subr.mxu0 0.0
    %1039 = vmatpush1.xpose.msra.mxu0 0.0
    %1040 = vmatprep.subr.mxu0 0.0
    %1041 = vmatpush1.xpose.msra.mxu0 0.0
    %1042 = vmatprep.subr.mxu0 0.0
    %1043 = vmatpush1.xpose.msra.mxu0 0.0
    %1044 = vmatprep.subr.mxu0 0.0
    %1045 = vmatpush1.xpose.msra.mxu0 0.0
    %1046 = vmatprep.subr.mxu0 0.0
    %1047 = vmatpush1.xpose.msra.mxu0 0.0
    %1048 = vmatprep.subr.mxu0 0.0
    %1049 = vmatpush1.xpose.msra.mxu0 0.0
    %1050 = vmatprep.subr.mxu0 0.0
    %1051 = vmatpush1.xpose.msra.mxu0 0.0
    %1052 = vmatprep.subr.mxu0 0.0
    %1053 = vmatpush1.xpose.msra.mxu0 0.0
    %1054 = vmatprep.subr.mxu0 0.0
    %1055 = vmatpush1.xpose.msra.mxu0 0.0
    %1056 = vmatprep.subr.mxu0 0.0
    %1057 = vmatpush1.xpose.msra.mxu0 0.0
    %1058 = vmatprep.subr.mxu0 0.0
    %1059 = vmatpush1.xpose.msra.mxu0 0.0
    %1060 = vmatprep.subr.mxu0 0.0
    %1061 = vmatpush1.xpose.msra.mxu0 0.0
    %1062 = vmatprep.subr.mxu0 0.0
    %1063 = vmatpush1.xpose.msra.mxu0 0.0
    %1064 = vmatprep.subr.mxu0 0.0
    %1065 = vmatpush1.xpose.msra.mxu0 0.0
    %1066 = vmatprep.subr.mxu0 0.0
    %1067 = vmatpush1.xpose.msra.mxu0 0.0
    %1068 = vmatprep.subr.mxu0 0.0
    %1069 = vmatpush1.xpose.msra.mxu0 0.0
    %1070 = vmatprep.subr.mxu0 0.0
    %1071 = vmatpush1.xpose.msra.mxu0 0.0
    %1072 = vmatprep.subr.mxu0 0.0
    %1073 = vmatpush1.xpose.msra.mxu0 0.0
    %1074 = vmatprep.subr.mxu0 0.0
    %1075 = vmatpush1.xpose.msra.mxu0 0.0
    %1076 = vmatprep.subr.mxu0 0.0
    %1077 = vmatpush1.xpose.msra.mxu0 0.0
    %1078 = vmatprep.subr.mxu0 0.0
    %1079 = vmatpush1.xpose.msra.mxu0 0.0
    %1080 = vmatprep.subr.mxu0 0.0
    %1081 = vmatpush1.xpose.msra.mxu0 0.0
    %1082 = vmatprep.subr.mxu0 0.0
    %1083 = vmatpush1.xpose.msra.mxu0 0.0
    %1084 = vmatprep.subr.mxu0 0.0
    %1085 = vmatpush1.xpose.msra.mxu0 0.0
    %1086 = vmatprep.subr.mxu0 0.0
    %1087 = vmatpush1.xpose.msra.mxu0 0.0
    %1088 = vmatprep.mubr.f32.mxu0 0.0
    %1089 = vmatmul.mubr.f32.gmra.mrb[0].mxu0 %v1019
    %v1090 = vpop.f32.mrb[0].mxu0
    %v1091 = vadd.f32 0.0, %v1090
    %v1092 = vpop.f32.mrb[0].mxu0
    %1093 = vdwg.mxu0
    %v1095 = vsel %vm1017, %v374, 0
    %v1098 = vsel %vm1017, %v462, 0
    %1100 = vmatprep.subr.mxu0 0.0
    %1101 = vmatpush1.xpose.msra.mxu0 %v1098
    %1102 = vmatprep.subr.mxu0 0.0
    %1103 = vmatpush1.xpose.msra.mxu0 0.0
    %1104 = vmatprep.subr.mxu0 0.0
    %1105 = vmatpush1.xpose.msra.mxu0 0.0
    %1106 = vmatprep.subr.mxu0 0.0
    %1107 = vmatpush1.xpose.msra.mxu0 0.0
    %1108 = vmatprep.subr.mxu0 0.0
    %1109 = vmatpush1.xpose.msra.mxu0 0.0
    %1110 = vmatprep.subr.mxu0 0.0
    %1111 = vmatpush1.xpose.msra.mxu0 0.0
    %1112 = vmatprep.subr.mxu0 0.0
    %1113 = vmatpush1.xpose.msra.mxu0 0.0
    %1114 = vmatprep.subr.mxu0 0.0
    %1115 = vmatpush1.xpose.msra.mxu0 0.0
    %1116 = vmatprep.subr.mxu0 0.0
    %1117 = vmatpush1.xpose.msra.mxu0 0.0
    %1118 = vmatprep.subr.mxu0 0.0
    %1119 = vmatpush1.xpose.msra.mxu0 0.0
    %1120 = vmatprep.subr.mxu0 0.0
    %1121 = vmatpush1.xpose.msra.mxu0 0.0
    %1122 = vmatprep.subr.mxu0 0.0
    %1123 = vmatpush1.xpose.msra.mxu0 0.0
    %1124 = vmatprep.subr.mxu0 0.0
    %1125 = vmatpush1.xpose.msra.mxu0 0.0
    %1126 = vmatprep.subr.mxu0 0.0
    %1127 = vmatpush1.xpose.msra.mxu0 0.0
    %1128 = vmatprep.subr.mxu0 0.0
    %1129 = vmatpush1.xpose.msra.mxu0 0.0
    %1130 = vmatprep.subr.mxu0 0.0
    %1131 = vmatpush1.xpose.msra.mxu0 0.0
    %1132 = vmatprep.subr.mxu0 0.0
    %1133 = vmatpush1.xpose.msra.mxu0 0.0
    %1134 = vmatprep.subr.mxu0 0.0
    %1135 = vmatpush1.xpose.msra.mxu0 0.0
    %1136 = vmatprep.subr.mxu0 0.0
    %1137 = vmatpush1.xpose.msra.mxu0 0.0
    %1138 = vmatprep.subr.mxu0 0.0
    %1139 = vmatpush1.xpose.msra.mxu0 0.0
    %1140 = vmatprep.subr.mxu0 0.0
    %1141 = vmatpush1.xpose.msra.mxu0 0.0
    %1142 = vmatprep.subr.mxu0 0.0
    %1143 = vmatpush1.xpose.msra.mxu0 0.0
    %1144 = vmatprep.subr.mxu0 0.0
    %1145 = vmatpush1.xpose.msra.mxu0 0.0
    %1146 = vmatprep.subr.mxu0 0.0
    %1147 = vmatpush1.xpose.msra.mxu0 0.0
    %1148 = vmatprep.subr.mxu0 0.0
    %1149 = vmatpush1.xpose.msra.mxu0 0.0
    %1150 = vmatprep.subr.mxu0 0.0
    %1151 = vmatpush1.xpose.msra.mxu0 0.0
    %1152 = vmatprep.subr.mxu0 0.0
    %1153 = vmatpush1.xpose.msra.mxu0 0.0
    %1154 = vmatprep.subr.mxu0 0.0
    %1155 = vmatpush1.xpose.msra.mxu0 0.0
    %1156 = vmatprep.subr.mxu0 0.0
    %1157 = vmatpush1.xpose.msra.mxu0 0.0
    %1158 = vmatprep.subr.mxu0 0.0
    %1159 = vmatpush1.xpose.msra.mxu0 0.0
    %1160 = vmatprep.subr.mxu0 0.0
    %1161 = vmatpush1.xpose.msra.mxu0 0.0
    %1162 = vmatprep.subr.mxu0 0.0
    %1163 = vmatpush1.xpose.msra.mxu0 0.0
    %1164 = vmatprep.mubr.f32.mxu0 0.0
    %1165 = vmatmul.mubr.f32.gmra.mrb[0].mxu0 %v1095
    %v1166 = vpop.f32.mrb[0].mxu0
    %v1167 = vadd.f32 0.0, %v1166
    %v1168 = vpop.f32.mrb[0].mxu0
    %1169 = vdwg.mxu0
    %v1171 = vsel %vm1017, %v375, 0
    %v1174 = vsel %vm1017, %v535, 0
    %1176 = vmatprep.subr.mxu0 0.0
    %1177 = vmatpush1.xpose.msra.mxu0 %v1174
    %1178 = vmatprep.subr.mxu0 0.0
    %1179 = vmatpush1.xpose.msra.mxu0 0.0
    %1180 = vmatprep.subr.mxu0 0.0
    %1181 = vmatpush1.xpose.msra.mxu0 0.0
    %1182 = vmatprep.subr.mxu0 0.0
    %1183 = vmatpush1.xpose.msra.mxu0 0.0
    %1184 = vmatprep.subr.mxu0 0.0
    %1185 = vmatpush1.xpose.msra.mxu0 0.0
    %1186 = vmatprep.subr.mxu0 0.0
    %1187 = vmatpush1.xpose.msra.mxu0 0.0
    %1188 = vmatprep.subr.mxu0 0.0
    %1189 = vmatpush1.xpose.msra.mxu0 0.0
    %1190 = vmatprep.subr.mxu0 0.0
    %1191 = vmatpush1.xpose.msra.mxu0 0.0
    %1192 = vmatprep.subr.mxu0 0.0
    %1193 = vmatpush1.xpose.msra.mxu0 0.0
    %1194 = vmatprep.subr.mxu0 0.0
    %1195 = vmatpush1.xpose.msra.mxu0 0.0
    %1196 = vmatprep.subr.mxu0 0.0
    %1197 = vmatpush1.xpose.msra.mxu0 0.0
    %1198 = vmatprep.subr.mxu0 0.0
    %1199 = vmatpush1.xpose.msra.mxu0 0.0
    %1200 = vmatprep.subr.mxu0 0.0
    %1201 = vmatpush1.xpose.msra.mxu0 0.0
    %1202 = vmatprep.subr.mxu0 0.0
    %1203 = vmatpush1.xpose.msra.mxu0 0.0
    %1204 = vmatprep.subr.mxu0 0.0
    %1205 = vmatpush1.xpose.msra.mxu0 0.0
    %1206 = vmatprep.subr.mxu0 0.0
    %1207 = vmatpush1.xpose.msra.mxu0 0.0
    %1208 = vmatprep.subr.mxu0 0.0
    %1209 = vmatpush1.xpose.msra.mxu0 0.0
    %1210 = vmatprep.subr.mxu0 0.0
    %1211 = vmatpush1.xpose.msra.mxu0 0.0
    %1212 = vmatprep.subr.mxu0 0.0
    %1213 = vmatpush1.xpose.msra.mxu0 0.0
    %1214 = vmatprep.subr.mxu0 0.0
    %1215 = vmatpush1.xpose.msra.mxu0 0.0
    %1216 = vmatprep.subr.mxu0 0.0
    %1217 = vmatpush1.xpose.msra.mxu0 0.0
    %1218 = vmatprep.subr.mxu0 0.0
    %1219 = vmatpush1.xpose.msra.mxu0 0.0
    %1220 = vmatprep.subr.mxu0 0.0
    %1221 = vmatpush1.xpose.msra.mxu0 0.0
    %1222 = vmatprep.subr.mxu0 0.0
    %1223 = vmatpush1.xpose.msra.mxu0 0.0
    %1224 = vmatprep.subr.mxu0 0.0
    %1225 = vmatpush1.xpose.msra.mxu0 0.0
    %1226 = vmatprep.subr.mxu0 0.0
    %1227 = vmatpush1.xpose.msra.mxu0 0.0
    %1228 = vmatprep.subr.mxu0 0.0
    %1229 = vmatpush1.xpose.msra.mxu0 0.0
    %1230 = vmatprep.subr.mxu0 0.0
    %1231 = vmatpush1.xpose.msra.mxu0 0.0
    %1232 = vmatprep.subr.mxu0 0.0
    %1233 = vmatpush1.xpose.msra.mxu0 0.0
    %1234 = vmatprep.subr.mxu0 0.0
    %1235 = vmatpush1.xpose.msra.mxu0 0.0
    %1236 = vmatprep.subr.mxu0 0.0
    %1237 = vmatpush1.xpose.msra.mxu0 0.0
    %1238 = vmatprep.subr.mxu0 0.0
    %1239 = vmatpush1.xpose.msra.mxu0 0.0
    %1240 = vmatprep.mubr.f32.mxu0 0.0
    %1241 = vmatmul.mubr.f32.gmra.mrb[0].mxu0 %v1171
    %v1242 = vpop.f32.mrb[0].mxu0
    %v1243 = vadd.f32 0.0, %v1242
    %v1244 = vpop.f32.mrb[0].mxu0
    %1245 = vdwg.mxu0
    %v1247 = vsel %vm1017, %v376, 0
    %v1250 = vsel %vm1017, %v540, 0
    %1252 = vmatprep.subr.mxu0 0.0
    %1253 = vmatpush1.xpose.msra.mxu0 %v1250
    %1254 = vmatprep.subr.mxu0 0.0
    %1255 = vmatpush1.xpose.msra.mxu0 0.0
    %1256 = vmatprep.subr.mxu0 0.0
    %1257 = vmatpush1.xpose.msra.mxu0 0.0
    %1258 = vmatprep.subr.mxu0 0.0
    %1259 = vmatpush1.xpose.msra.mxu0 0.0
    %1260 = vmatprep.subr.mxu0 0.0
    %1261 = vmatpush1.xpose.msra.mxu0 0.0
    %1262 = vmatprep.subr.mxu0 0.0
    %1263 = vmatpush1.xpose.msra.mxu0 0.0
    %1264 = vmatprep.subr.mxu0 0.0
    %1265 = vmatpush1.xpose.msra.mxu0 0.0
    %1266 = vmatprep.subr.mxu0 0.0
    %1267 = vmatpush1.xpose.msra.mxu0 0.0
    %1268 = vmatprep.subr.mxu0 0.0
    %1269 = vmatpush1.xpose.msra.mxu0 0.0
    %1270 = vmatprep.subr.mxu0 0.0
    %1271 = vmatpush1.xpose.msra.mxu0 0.0
    %1272 = vmatprep.subr.mxu0 0.0
    %1273 = vmatpush1.xpose.msra.mxu0 0.0
    %1274 = vmatprep.subr.mxu0 0.0
    %1275 = vmatpush1.xpose.msra.mxu0 0.0
    %1276 = vmatprep.subr.mxu0 0.0
    %1277 = vmatpush1.xpose.msra.mxu0 0.0
    %1278 = vmatprep.subr.mxu0 0.0
    %1279 = vmatpush1.xpose.msra.mxu0 0.0
    %1280 = vmatprep.subr.mxu0 0.0
    %1281 = vmatpush1.xpose.msra.mxu0 0.0
    %1282 = vmatprep.subr.mxu0 0.0
    %1283 = vmatpush1.xpose.msra.mxu0 0.0
    %1284 = vmatprep.subr.mxu0 0.0
    %1285 = vmatpush1.xpose.msra.mxu0 0.0
    %1286 = vmatprep.subr.mxu0 0.0
    %1287 = vmatpush1.xpose.msra.mxu0 0.0
    %1288 = vmatprep.subr.mxu0 0.0
    %1289 = vmatpush1.xpose.msra.mxu0 0.0
    %1290 = vmatprep.subr.mxu0 0.0
    %1291 = vmatpush1.xpose.msra.mxu0 0.0
    %1292 = vmatprep.subr.mxu0 0.0
    %1293 = vmatpush1.xpose.msra.mxu0 0.0
    %1294 = vmatprep.subr.mxu0 0.0
    %1295 = vmatpush1.xpose.msra.mxu0 0.0
    %1296 = vmatprep.subr.mxu0 0.0
    %1297 = vmatpush1.xpose.msra.mxu0 0.0
    %1298 = vmatprep.subr.mxu0 0.0
    %1299 = vmatpush1.xpose.msra.mxu0 0.0
    %1300 = vmatprep.subr.mxu0 0.0
    %1301 = vmatpush1.xpose.msra.mxu0 0.0
    %1302 = vmatprep.subr.mxu0 0.0
    %1303 = vmatpush1.xpose.msra.mxu0 0.0
    %1304 = vmatprep.subr.mxu0 0.0
    %1305 = vmatpush1.xpose.msra.mxu0 0.0
    %1306 = vmatprep.subr.mxu0 0.0
    %1307 = vmatpush1.xpose.msra.mxu0 0.0
    %1308 = vmatprep.subr.mxu0 0.0
    %1309 = vmatpush1.xpose.msra.mxu0 0.0
    %1310 = vmatprep.subr.mxu0 0.0
    %1311 = vmatpush1.xpose.msra.mxu0 0.0
    %1312 = vmatprep.subr.mxu0 0.0
    %1313 = vmatpush1.xpose.msra.mxu0 0.0
    %1314 = vmatprep.subr.mxu0 0.0
    %1315 = vmatpush1.xpose.msra.mxu0 0.0
    %1316 = vmatprep.mubr.f32.mxu0 0.0
    %1317 = vmatmul.mubr.f32.gmra.mrb[0].mxu0 %v1247
    %v1318 = vpop.f32.mrb[0].mxu0
    %v1319 = vadd.f32 0.0, %v1318
    %v1320 = vpop.f32.mrb[0].mxu0
    %1321 = vdwg.mxu0
    %v1323 = vsel %vm1017, %v377, 0
    %v1326 = vsel %vm1017, %v613, 0
    %1328 = vmatprep.subr.mxu0 0.0
    %1329 = vmatpush1.xpose.msra.mxu0 %v1326
    %1330 = vmatprep.subr.mxu0 0.0
    %1331 = vmatpush1.xpose.msra.mxu0 0.0
    %1332 = vmatprep.subr.mxu0 0.0
    %1333 = vmatpush1.xpose.msra.mxu0 0.0
    %1334 = vmatprep.subr.mxu0 0.0
    %1335 = vmatpush1.xpose.msra.mxu0 0.0
    %1336 = vmatprep.subr.mxu0 0.0
    %1337 = vmatpush1.xpose.msra.mxu0 0.0
    %1338 = vmatprep.subr.mxu0 0.0
    %1339 = vmatpush1.xpose.msra.mxu0 0.0
    %1340 = vmatprep.subr.mxu0 0.0
    %1341 = vmatpush1.xpose.msra.mxu0 0.0
    %1342 = vmatprep.subr.mxu0 0.0
    %1343 = vmatpush1.xpose.msra.mxu0 0.0
    %1344 = vmatprep.subr.mxu0 0.0
    %1345 = vmatpush1.xpose.msra.mxu0 0.0
    %1346 = vmatprep.subr.mxu0 0.0
    %1347 = vmatpush1.xpose.msra.mxu0 0.0
    %1348 = vmatprep.subr.mxu0 0.0
    %1349 = vmatpush1.xpose.msra.mxu0 0.0
    %1350 = vmatprep.subr.mxu0 0.0
    %1351 = vmatpush1.xpose.msra.mxu0 0.0
    %1352 = vmatprep.subr.mxu0 0.0
    %1353 = vmatpush1.xpose.msra.mxu0 0.0
    %1354 = vmatprep.subr.mxu0 0.0
    %1355 = vmatpush1.xpose.msra.mxu0 0.0
    %1356 = vmatprep.subr.mxu0 0.0
    %1357 = vmatpush1.xpose.msra.mxu0 0.0
    %1358 = vmatprep.subr.mxu0 0.0
    %1359 = vmatpush1.xpose.msra.mxu0 0.0
    %1360 = vmatprep.subr.mxu0 0.0
    %1361 = vmatpush1.xpose.msra.mxu0 0.0
    %1362 = vmatprep.subr.mxu0 0.0
    %1363 = vmatpush1.xpose.msra.mxu0 0.0
    %1364 = vmatprep.subr.mxu0 0.0
    %1365 = vmatpush1.xpose.msra.mxu0 0.0
    %1366 = vmatprep.subr.mxu0 0.0
    %1367 = vmatpush1.xpose.msra.mxu0 0.0
    %1368 = vmatprep.subr.mxu0 0.0
    %1369 = vmatpush1.xpose.msra.mxu0 0.0
    %1370 = vmatprep.subr.mxu0 0.0
    %1371 = vmatpush1.xpose.msra.mxu0 0.0
    %1372 = vmatprep.subr.mxu0 0.0
    %1373 = vmatpush1.xpose.msra.mxu0 0.0
    %1374 = vmatprep.subr.mxu0 0.0
    %1375 = vmatpush1.xpose.msra.mxu0 0.0
    %1376 = vmatprep.subr.mxu0 0.0
    %1377 = vmatpush1.xpose.msra.mxu0 0.0
    %1378 = vmatprep.subr.mxu0 0.0
    %1379 = vmatpush1.xpose.msra.mxu0 0.0
    %1380 = vmatprep.subr.mxu0 0.0
    %1381 = vmatpush1.xpose.msra.mxu0 0.0
    %1382 = vmatprep.subr.mxu0 0.0
    %1383 = vmatpush1.xpose.msra.mxu0 0.0
    %1384 = vmatprep.subr.mxu0 0.0
    %1385 = vmatpush1.xpose.msra.mxu0 0.0
    %1386 = vmatprep.subr.mxu0 0.0
    %1387 = vmatpush1.xpose.msra.mxu0 0.0
    %1388 = vmatprep.subr.mxu0 0.0
    %1389 = vmatpush1.xpose.msra.mxu0 0.0
    %1390 = vmatprep.subr.mxu0 0.0
    %1391 = vmatpush1.xpose.msra.mxu0 0.0
    %1392 = vmatprep.mubr.f32.mxu0 0.0
    %1393 = vmatmul.mubr.f32.gmra.mrb[0].mxu0 %v1323
    %v1394 = vpop.f32.mrb[0].mxu0
    %v1395 = vadd.f32 0.0, %v1394
    %v1396 = vpop.f32.mrb[0].mxu0
    %1397 = vdwg.mxu0
    %v1399 = vsel %vm1017, %v378, 0
    %v1402 = vsel %vm1017, %v618, 0
    %1404 = vmatprep.subr.mxu0 0.0
    %1405 = vmatpush1.xpose.msra.mxu0 %v1402
    %1406 = vmatprep.subr.mxu0 0.0
    %1407 = vmatpush1.xpose.msra.mxu0 0.0
    %1408 = vmatprep.subr.mxu0 0.0
    %1409 = vmatpush1.xpose.msra.mxu0 0.0
    %1410 = vmatprep.subr.mxu0 0.0
    %1411 = vmatpush1.xpose.msra.mxu0 0.0
    %1412 = vmatprep.subr.mxu0 0.0
    %1413 = vmatpush1.xpose.msra.mxu0 0.0
    %1414 = vmatprep.subr.mxu0 0.0
    %1415 = vmatpush1.xpose.msra.mxu0 0.0
    %1416 = vmatprep.subr.mxu0 0.0
    %1417 = vmatpush1.xpose.msra.mxu0 0.0
    %1418 = vmatprep.subr.mxu0 0.0
    %1419 = vmatpush1.xpose.msra.mxu0 0.0
    %1420 = vmatprep.subr.mxu0 0.0
    %1421 = vmatpush1.xpose.msra.mxu0 0.0
    %1422 = vmatprep.subr.mxu0 0.0
    %1423 = vmatpush1.xpose.msra.mxu0 0.0
    %1424 = vmatprep.subr.mxu0 0.0
    %1425 = vmatpush1.xpose.msra.mxu0 0.0
    %1426 = vmatprep.subr.mxu0 0.0
    %1427 = vmatpush1.xpose.msra.mxu0 0.0
    %1428 = vmatprep.subr.mxu0 0.0
    %1429 = vmatpush1.xpose.msra.mxu0 0.0
    %1430 = vmatprep.subr.mxu0 0.0
    %1431 = vmatpush1.xpose.msra.mxu0 0.0
    %1432 = vmatprep.subr.mxu0 0.0
    %1433 = vmatpush1.xpose.msra.mxu0 0.0
    %1434 = vmatprep.subr.mxu0 0.0
    %1435 = vmatpush1.xpose.msra.mxu0 0.0
    %1436 = vmatprep.subr.mxu0 0.0
    %1437 = vmatpush1.xpose.msra.mxu0 0.0
    %1438 = vmatprep.subr.mxu0 0.0
    %1439 = vmatpush1.xpose.msra.mxu0 0.0
    %1440 = vmatprep.subr.mxu0 0.0
    %1441 = vmatpush1.xpose.msra.mxu0 0.0
    %1442 = vmatprep.subr.mxu0 0.0
    %1443 = vmatpush1.xpose.msra.mxu0 0.0
    %1444 = vmatprep.subr.mxu0 0.0
    %1445 = vmatpush1.xpose.msra.mxu0 0.0
    %1446 = vmatprep.subr.mxu0 0.0
    %1447 = vmatpush1.xpose.msra.mxu0 0.0
    %1448 = vmatprep.subr.mxu0 0.0
    %1449 = vmatpush1.xpose.msra.mxu0 0.0
    %1450 = vmatprep.subr.mxu0 0.0
    %1451 = vmatpush1.xpose.msra.mxu0 0.0
    %1452 = vmatprep.subr.mxu0 0.0
    %1453 = vmatpush1.xpose.msra.mxu0 0.0
    %1454 = vmatprep.subr.mxu0 0.0
    %1455 = vmatpush1.xpose.msra.mxu0 0.0
    %1456 = vmatprep.subr.mxu0 0.0
    %1457 = vmatpush1.xpose.msra.mxu0 0.0
    %1458 = vmatprep.subr.mxu0 0.0
    %1459 = vmatpush1.xpose.msra.mxu0 0.0
    %1460 = vmatprep.subr.mxu0 0.0
    %1461 = vmatpush1.xpose.msra.mxu0 0.0
    %1462 = vmatprep.subr.mxu0 0.0
    %1463 = vmatpush1.xpose.msra.mxu0 0.0
    %1464 = vmatprep.subr.mxu0 0.0
    %1465 = vmatpush1.xpose.msra.mxu0 0.0
    %1466 = vmatprep.subr.mxu0 0.0
    %1467 = vmatpush1.xpose.msra.mxu0 0.0
    %1468 = vmatprep.mubr.f32.mxu0 0.0
    %1469 = vmatmul.mubr.f32.gmra.mrb[0].mxu0 %v1399
    %v1470 = vpop.f32.mrb[0].mxu0
    %v1471 = vadd.f32 0.0, %v1470
    %v1472 = vpop.f32.mrb[0].mxu0
    %1473 = vdwg.mxu0
    %v1475 = vsel %vm1017, %v379, 0
    %v1478 = vsel %vm1017, %v691, 0
    %1480 = vmatprep.subr.mxu0 0.0
    %1481 = vmatpush1.xpose.msra.mxu0 %v1478
    %1482 = vmatprep.subr.mxu0 0.0
    %1483 = vmatpush1.xpose.msra.mxu0 0.0
    %1484 = vmatprep.subr.mxu0 0.0
    %1485 = vmatpush1.xpose.msra.mxu0 0.0
    %1486 = vmatprep.subr.mxu0 0.0
    %1487 = vmatpush1.xpose.msra.mxu0 0.0
    %1488 = vmatprep.subr.mxu0 0.0
    %1489 = vmatpush1.xpose.msra.mxu0 0.0
    %1490 = vmatprep.subr.mxu0 0.0
    %1491 = vmatpush1.xpose.msra.mxu0 0.0
    %1492 = vmatprep.subr.mxu0 0.0
    %1493 = vmatpush1.xpose.msra.mxu0 0.0
    %1494 = vmatprep.subr.mxu0 0.0
    %1495 = vmatpush1.xpose.msra.mxu0 0.0
    %1496 = vmatprep.subr.mxu0 0.0
    %1497 = vmatpush1.xpose.msra.mxu0 0.0
    %1498 = vmatprep.subr.mxu0 0.0
    %1499 = vmatpush1.xpose.msra.mxu0 0.0
    %1500 = vmatprep.subr.mxu0 0.0
    %1501 = vmatpush1.xpose.msra.mxu0 0.0
    %1502 = vmatprep.subr.mxu0 0.0
    %1503 = vmatpush1.xpose.msra.mxu0 0.0
    %1504 = vmatprep.subr.mxu0 0.0
    %1505 = vmatpush1.xpose.msra.mxu0 0.0
    %1506 = vmatprep.subr.mxu0 0.0
    %1507 = vmatpush1.xpose.msra.mxu0 0.0
    %1508 = vmatprep.subr.mxu0 0.0
    %1509 = vmatpush1.xpose.msra.mxu0 0.0
    %1510 = vmatprep.subr.mxu0 0.0
    %1511 = vmatpush1.xpose.msra.mxu0 0.0
    %1512 = vmatprep.subr.mxu0 0.0
    %1513 = vmatpush1.xpose.msra.mxu0 0.0
    %1514 = vmatprep.subr.mxu0 0.0
    %1515 = vmatpush1.xpose.msra.mxu0 0.0
    %1516 = vmatprep.subr.mxu0 0.0
    %1517 = vmatpush1.xpose.msra.mxu0 0.0
    %1518 = vmatprep.subr.mxu0 0.0
    %1519 = vmatpush1.xpose.msra.mxu0 0.0
    %1520 = vmatprep.subr.mxu0 0.0
    %1521 = vmatpush1.xpose.msra.mxu0 0.0
    %1522 = vmatprep.subr.mxu0 0.0
    %1523 = vmatpush1.xpose.msra.mxu0 0.0
    %1524 = vmatprep.subr.mxu0 0.0
    %1525 = vmatpush1.xpose.msra.mxu0 0.0
    %1526 = vmatprep.subr.mxu0 0.0
    %1527 = vmatpush1.xpose.msra.mxu0 0.0
    %1528 = vmatprep.subr.mxu0 0.0
    %1529 = vmatpush1.xpose.msra.mxu0 0.0
    %1530 = vmatprep.subr.mxu0 0.0
    %1531 = vmatpush1.xpose.msra.mxu0 0.0
    %1532 = vmatprep.subr.mxu0 0.0
    %1533 = vmatpush1.xpose.msra.mxu0 0.0
    %1534 = vmatprep.subr.mxu0 0.0
    %1535 = vmatpush1.xpose.msra.mxu0 0.0
    %1536 = vmatprep.subr.mxu0 0.0
    %1537 = vmatpush1.xpose.msra.mxu0 0.0
    %1538 = vmatprep.subr.mxu0 0.0
    %1539 = vmatpush1.xpose.msra.mxu0 0.0
    %1540 = vmatprep.subr.mxu0 0.0
    %1541 = vmatpush1.xpose.msra.mxu0 0.0
    %1542 = vmatprep.subr.mxu0 0.0
    %1543 = vmatpush1.xpose.msra.mxu0 0.0
    %1544 = vmatprep.mubr.f32.mxu0 0.0
    %1545 = vmatmul.mubr.f32.gmra.mrb[0].mxu0 %v1475
    %v1546 = vpop.f32.mrb[0].mxu0
    %v1547 = vadd.f32 0.0, %v1546
    %v1548 = vpop.f32.mrb[0].mxu0
    %1549 = vdwg.mxu0
    %v1551 = vsel %vm1017, %v380, 0
    %v1554 = vsel %vm1017, %v696, 0
    %1556 = vmatprep.subr.mxu0 0.0
    %1557 = vmatpush1.xpose.msra.mxu0 %v1554
    %1558 = vmatprep.subr.mxu0 0.0
    %1559 = vmatpush1.xpose.msra.mxu0 0.0
    %1560 = vmatprep.subr.mxu0 0.0
    %1561 = vmatpush1.xpose.msra.mxu0 0.0
    %1562 = vmatprep.subr.mxu0 0.0
    %1563 = vmatpush1.xpose.msra.mxu0 0.0
    %1564 = vmatprep.subr.mxu0 0.0
    %1565 = vmatpush1.xpose.msra.mxu0 0.0
    %1566 = vmatprep.subr.mxu0 0.0
    %1567 = vmatpush1.xpose.msra.mxu0 0.0
    %1568 = vmatprep.subr.mxu0 0.0
    %1569 = vmatpush1.xpose.msra.mxu0 0.0
    %1570 = vmatprep.subr.mxu0 0.0
    %1571 = vmatpush1.xpose.msra.mxu0 0.0
    %1572 = vmatprep.subr.mxu0 0.0
    %1573 = vmatpush1.xpose.msra.mxu0 0.0
    %1574 = vmatprep.subr.mxu0 0.0
    %1575 = vmatpush1.xpose.msra.mxu0 0.0
    %1576 = vmatprep.subr.mxu0 0.0
    %1577 = vmatpush1.xpose.msra.mxu0 0.0
    %1578 = vmatprep.subr.mxu0 0.0
    %1579 = vmatpush1.xpose.msra.mxu0 0.0
    %1580 = vmatprep.subr.mxu0 0.0
    %1581 = vmatpush1.xpose.msra.mxu0 0.0
    %1582 = vmatprep.subr.mxu0 0.0
    %1583 = vmatpush1.xpose.msra.mxu0 0.0
    %1584 = vmatprep.subr.mxu0 0.0
    %1585 = vmatpush1.xpose.msra.mxu0 0.0
    %1586 = vmatprep.subr.mxu0 0.0
    %1587 = vmatpush1.xpose.msra.mxu0 0.0
    %1588 = vmatprep.subr.mxu0 0.0
    %1589 = vmatpush1.xpose.msra.mxu0 0.0
    %1590 = vmatprep.subr.mxu0 0.0
    %1591 = vmatpush1.xpose.msra.mxu0 0.0
    %1592 = vmatprep.subr.mxu0 0.0
    %1593 = vmatpush1.xpose.msra.mxu0 0.0
    %1594 = vmatprep.subr.mxu0 0.0
    %1595 = vmatpush1.xpose.msra.mxu0 0.0
    %1596 = vmatprep.subr.mxu0 0.0
    %1597 = vmatpush1.xpose.msra.mxu0 0.0
    %1598 = vmatprep.subr.mxu0 0.0
    %1599 = vmatpush1.xpose.msra.mxu0 0.0
    %1600 = vmatprep.subr.mxu0 0.0
    %1601 = vmatpush1.xpose.msra.mxu0 0.0
    %1602 = vmatprep.subr.mxu0 0.0
    %1603 = vmatpush1.xpose.msra.mxu0 0.0
    %1604 = vmatprep.subr.mxu0 0.0
    %1605 = vmatpush1.xpose.msra.mxu0 0.0
    %1606 = vmatprep.subr.mxu0 0.0
    %1607 = vmatpush1.xpose.msra.mxu0 0.0
    %1608 = vmatprep.subr.mxu0 0.0
    %1609 = vmatpush1.xpose.msra.mxu0 0.0
    %1610 = vmatprep.subr.mxu0 0.0
    %1611 = vmatpush1.xpose.msra.mxu0 0.0
    %1612 = vmatprep.subr.mxu0 0.0
    %1613 = vmatpush1.xpose.msra.mxu0 0.0
    %1614 = vmatprep.subr.mxu0 0.0
    %1615 = vmatpush1.xpose.msra.mxu0 0.0
    %1616 = vmatprep.subr.mxu0 0.0
    %1617 = vmatpush1.xpose.msra.mxu0 0.0
    %1618 = vmatprep.subr.mxu0 0.0
    %1619 = vmatpush1.xpose.msra.mxu0 0.0
    %1620 = vmatprep.mubr.f32.mxu0 0.0
    %1621 = vmatmul.mubr.f32.gmra.mrb[0].mxu0 %v1551
    %v1622 = vpop.f32.mrb[0].mxu0
    %v1623 = vadd.f32 0.0, %v1622
    %v1624 = vpop.f32.mrb[0].mxu0
    %1625 = vdwg.mxu0
    %v1626 = vsel %vm1017, %v1091, -inf
    %1627 = vmax.xlane.f32.xlu0 %v1626
    %v1628 = vpop.xlane.xlu0 %1627
    %v1629 = vsel %vm1017, %v1167, -inf
    %1630 = vmax.xlane.f32.xlu0 %v1629
    %v1631 = vpop.xlane.xlu0 %1630
    %v1632 = vsel %vm1017, %v1243, -inf
    %1633 = vmax.xlane.f32.xlu0 %v1632
    %v1634 = vpop.xlane.xlu0 %1633
    %v1635 = vsel %vm1017, %v1319, -inf
    %1636 = vmax.xlane.f32.xlu0 %v1635
    %v1637 = vpop.xlane.xlu0 %1636
    %v1638 = vsel %vm1017, %v1395, -inf
    %1639 = vmax.xlane.f32.xlu0 %v1638
    %v1640 = vpop.xlane.xlu0 %1639
    %v1641 = vsel %vm1017, %v1471, -inf
    %1642 = vmax.xlane.f32.xlu0 %v1641
    %v1643 = vpop.xlane.xlu0 %1642
    %v1644 = vsel %vm1017, %v1547, -inf
    %1645 = vmax.xlane.f32.xlu0 %v1644
    %v1646 = vpop.xlane.xlu0 %1645
    %v1647 = vsel %vm1017, %v1623, -inf
    %1648 = vmax.xlane.f32.xlu0 %v1647
    %v1649 = vpop.xlane.xlu0 %1648
    %v1650 = vsub.f32 %v1091, %v1628
    %v1651 = vsub.f32 %v1167, %v1631
    %v1652 = vsub.f32 %v1243, %v1634
    %v1653 = vsub.f32 %v1319, %v1637
    %v1654 = vsub.f32 %v1395, %v1640
    %v1655 = vsub.f32 %v1471, %v1643
    %v1656 = vsub.f32 %v1547, %v1646
    %v1657 = vsub.f32 %v1623, %v1649
    %v1658 = vmul.f32 %v1650, 1.442695
    %v1659 = vpow.pop %v1658
    %v1660 = vmul.f32 %v1651, 1.442695
    %v1661 = vpow.pop %v1660
    %v1662 = vmul.f32 %v1652, 1.442695
    %v1663 = vpow.pop %v1662
    %v1664 = vmul.f32 %v1653, 1.442695
    %v1665 = vpow.pop %v1664
    %v1666 = vmul.f32 %v1654, 1.442695
    %v1667 = vpow.pop %v1666
    %v1668 = vmul.f32 %v1655, 1.442695
    %v1669 = vpow.pop %v1668
    %v1670 = vmul.f32 %v1656, 1.442695
    %v1671 = vpow.pop %v1670
    %v1672 = vmul.f32 %v1657, 1.442695
    %v1673 = vpow.pop %v1672
    %v1674 = vsel %vm1017, %v1659, 0.0
    %1675 = vadd.xlane.f32.xlu0 %v1674
    %v1676 = vpop.xlane.xlu0 %1675
    %v1677 = vsel %vm1017, %v1661, 0.0
    %1678 = vadd.xlane.f32.xlu0 %v1677
    %v1679 = vpop.xlane.xlu0 %1678
    %v1680 = vsel %vm1017, %v1663, 0.0
    %1681 = vadd.xlane.f32.xlu0 %v1680
    %v1682 = vpop.xlane.xlu0 %1681
    %v1683 = vsel %vm1017, %v1665, 0.0
    %1684 = vadd.xlane.f32.xlu0 %v1683
    %v1685 = vpop.xlane.xlu0 %1684
    %v1686 = vsel %vm1017, %v1667, 0.0
    %1687 = vadd.xlane.f32.xlu0 %v1686
    %v1688 = vpop.xlane.xlu0 %1687
    %v1689 = vsel %vm1017, %v1669, 0.0
    %1690 = vadd.xlane.f32.xlu0 %v1689
    %v1691 = vpop.xlane.xlu0 %1690
    %v1692 = vsel %vm1017, %v1671, 0.0
    %1693 = vadd.xlane.f32.xlu0 %v1692
    %v1694 = vpop.xlane.xlu0 %1693
    %v1695 = vsel %vm1017, %v1673, 0.0
    %1696 = vadd.xlane.f32.xlu0 %v1695
    %v1697 = vpop.xlane.xlu0 %1696
    %v1698 = vrcp.pop %v1676
    %v1699 = vrcp.pop %v1679
    %v1700 = vrcp.pop %v1682
    %v1701 = vrcp.pop %v1685
    %v1702 = vrcp.pop %v1688
    %v1703 = vrcp.pop %v1691
    %v1704 = vrcp.pop %v1694
    %v1705 = vrcp.pop %v1697
    %v1706 = vmul.f32 %v1659, %v1698
    %v1707 = vmul.f32 %v1661, %v1699
    %v1708 = vmul.f32 %v1663, %v1700
    %v1709 = vmul.f32 %v1665, %v1701
    %v1710 = vmul.f32 %v1667, %v1702
    %v1711 = vmul.f32 %v1669, %v1703
    %v1712 = vmul.f32 %v1671, %v1704
    %v1713 = vmul.f32 %v1673, %v1705
    %v1715 = vsel %vm1017, %v1706, 0
    %1717 = vmatprep.subr.mxu0 0.0
    %1718 = vmatpush1.msra.mxu0 %v775
    %1719 = vmatprep.subr.mxu0 0.0
    %1720 = vmatpush1.msra.mxu0 0.0
    %1721 = vmatprep.subr.mxu0 0.0
    %1722 = vmatpush1.msra.mxu0 0.0
    %1723 = vmatprep.subr.mxu0 0.0
    %1724 = vmatpush1.msra.mxu0 0.0
    %1725 = vmatprep.subr.mxu0 0.0
    %1726 = vmatpush1.msra.mxu0 0.0
    %1727 = vmatprep.subr.mxu0 0.0
    %1728 = vmatpush1.msra.mxu0 0.0
    %1729 = vmatprep.subr.mxu0 0.0
    %1730 = vmatpush1.msra.mxu0 0.0
    %1731 = vmatprep.subr.mxu0 0.0
    %1732 = vmatpush1.msra.mxu0 0.0
    %1733 = vmatprep.subr.mxu0 0.0
    %1734 = vmatpush1.msra.mxu0 0.0
    %1735 = vmatprep.subr.mxu0 0.0
    %1736 = vmatpush1.msra.mxu0 0.0
    %1737 = vmatprep.subr.mxu0 0.0
    %1738 = vmatpush1.msra.mxu0 0.0
    %1739 = vmatprep.subr.mxu0 0.0
    %1740 = vmatpush1.msra.mxu0 0.0
    %1741 = vmatprep.subr.mxu0 0.0
    %1742 = vmatpush1.msra.mxu0 0.0
    %1743 = vmatprep.subr.mxu0 0.0
    %1744 = vmatpush1.msra.mxu0 0.0
    %1745 = vmatprep.subr.mxu0 0.0
    %1746 = vmatpush1.msra.mxu0 0.0
    %1747 = vmatprep.subr.mxu0 0.0
    %1748 = vmatpush1.msra.mxu0 0.0
    %1749 = vmatprep.subr.mxu0 0.0
    %1750 = vmatpush1.msra.mxu0 0.0
    %1751 = vmatprep.subr.mxu0 0.0
    %1752 = vmatpush1.msra.mxu0 0.0
    %1753 = vmatprep.subr.mxu0 0.0
    %1754 = vmatpush1.msra.mxu0 0.0
    %1755 = vmatprep.subr.mxu0 0.0
    %1756 = vmatpush1.msra.mxu0 0.0
    %1757 = vmatprep.subr.mxu0 0.0
    %1758 = vmatpush1.msra.mxu0 0.0
    %1759 = vmatprep.subr.mxu0 0.0
    %1760 = vmatpush1.msra.mxu0 0.0
    %1761 = vmatprep.subr.mxu0 0.0
    %1762 = vmatpush1.msra.mxu0 0.0
    %1763 = vmatprep.subr.mxu0 0.0
    %1764 = vmatpush1.msra.mxu0 0.0
    %1765 = vmatprep.subr.mxu0 0.0
    %1766 = vmatpush1.msra.mxu0 0.0
    %1767 = vmatprep.subr.mxu0 0.0
    %1768 = vmatpush1.msra.mxu0 0.0
    %1769 = vmatprep.subr.mxu0 0.0
    %1770 = vmatpush1.msra.mxu0 0.0
    %1771 = vmatprep.subr.mxu0 0.0
    %1772 = vmatpush1.msra.mxu0 0.0
    %1773 = vmatprep.subr.mxu0 0.0
    %1774 = vmatpush1.msra.mxu0 0.0
    %1775 = vmatprep.subr.mxu0 0.0
    %1776 = vmatpush1.msra.mxu0 0.0
    %1777 = vmatprep.subr.mxu0 0.0
    %1778 = vmatpush1.msra.mxu0 0.0
    %1779 = vmatprep.subr.mxu0 0.0
    %1780 = vmatpush1.msra.mxu0 0.0
    %1781 = vmatprep.mubr.f32.mxu0 0.0
    %1782 = vmatmul.mubr.f32.gmra.mrb[0].mxu0 %v1715
    %v1783 = vpop.f32.mrb[0].mxu0
    %v1784 = vadd.f32 0.0, %v1783
    %v1785 = vpop.f32.mrb[0].mxu0
    %1786 = vdwg.mxu0
    %v1788 = vsel %vm1017, %v1707, 0
    %1790 = vmatprep.subr.mxu0 0.0
    %1791 = vmatpush1.msra.mxu0 %v780
    %1792 = vmatprep.subr.mxu0 0.0
    %1793 = vmatpush1.msra.mxu0 0.0
    %1794 = vmatprep.subr.mxu0 0.0
    %1795 = vmatpush1.msra.mxu0 0.0
    %1796 = vmatprep.subr.mxu0 0.0
    %1797 = vmatpush1.msra.mxu0 0.0
    %1798 = vmatprep.subr.mxu0 0.0
    %1799 = vmatpush1.msra.mxu0 0.0
    %1800 = vmatprep.subr.mxu0 0.0
    %1801 = vmatpush1.msra.mxu0 0.0
    %1802 = vmatprep.subr.mxu0 0.0
    %1803 = vmatpush1.msra.mxu0 0.0
    %1804 = vmatprep.subr.mxu0 0.0
    %1805 = vmatpush1.msra.mxu0 0.0
    %1806 = vmatprep.subr.mxu0 0.0
    %1807 = vmatpush1.msra.mxu0 0.0
    %1808 = vmatprep.subr.mxu0 0.0
    %1809 = vmatpush1.msra.mxu0 0.0
    %1810 = vmatprep.subr.mxu0 0.0
    %1811 = vmatpush1.msra.mxu0 0.0
    %1812 = vmatprep.subr.mxu0 0.0
    %1813 = vmatpush1.msra.mxu0 0.0
    %1814 = vmatprep.subr.mxu0 0.0
    %1815 = vmatpush1.msra.mxu0 0.0
    %1816 = vmatprep.subr.mxu0 0.0
    %1817 = vmatpush1.msra.mxu0 0.0
    %1818 = vmatprep.subr.mxu0 0.0
    %1819 = vmatpush1.msra.mxu0 0.0
    %1820 = vmatprep.subr.mxu0 0.0
    %1821 = vmatpush1.msra.mxu0 0.0
    %1822 = vmatprep.subr.mxu0 0.0
    %1823 = vmatpush1.msra.mxu0 0.0
    %1824 = vmatprep.subr.mxu0 0.0
    %1825 = vmatpush1.msra.mxu0 0.0
    %1826 = vmatprep.subr.mxu0 0.0
    %1827 = vmatpush1.msra.mxu0 0.0
    %1828 = vmatprep.subr.mxu0 0.0
    %1829 = vmatpush1.msra.mxu0 0.0
    %1830 = vmatprep.subr.mxu0 0.0
    %1831 = vmatpush1.msra.mxu0 0.0
    %1832 = vmatprep.subr.mxu0 0.0
    %1833 = vmatpush1.msra.mxu0 0.0
    %1834 = vmatprep.subr.mxu0 0.0
    %1835 = vmatpush1.msra.mxu0 0.0
    %1836 = vmatprep.subr.mxu0 0.0
    %1837 = vmatpush1.msra.mxu0 0.0
    %1838 = vmatprep.subr.mxu0 0.0
    %1839 = vmatpush1.msra.mxu0 0.0
    %1840 = vmatprep.subr.mxu0 0.0
    %1841 = vmatpush1.msra.mxu0 0.0
    %1842 = vmatprep.subr.mxu0 0.0
    %1843 = vmatpush1.msra.mxu0 0.0
    %1844 = vmatprep.subr.mxu0 0.0
    %1845 = vmatpush1.msra.mxu0 0.0
    %1846 = vmatprep.subr.mxu0 0.0
    %1847 = vmatpush1.msra.mxu0 0.0
    %1848 = vmatprep.subr.mxu0 0.0
    %1849 = vmatpush1.msra.mxu0 0.0
    %1850 = vmatprep.subr.mxu0 0.0
    %1851 = vmatpush1.msra.mxu0 0.0
    %1852 = vmatprep.subr.mxu0 0.0
    %1853 = vmatpush1.msra.mxu0 0.0
    %1854 = vmatprep.mubr.f32.mxu0 0.0
    %1855 = vmatmul.mubr.f32.gmra.mrb[0].mxu0 %v1788
    %v1856 = vpop.f32.mrb[0].mxu0
    %v1857 = vadd.f32 0.0, %v1856
    %v1858 = vpop.f32.mrb[0].mxu0
    %1859 = vdwg.mxu0
    %v1861 = vsel %vm1017, %v1708, 0
    %1863 = vmatprep.subr.mxu0 0.0
    %1864 = vmatpush1.msra.mxu0 %v853
    %1865 = vmatprep.subr.mxu0 0.0
    %1866 = vmatpush1.msra.mxu0 0.0
    %1867 = vmatprep.subr.mxu0 0.0
    %1868 = vmatpush1.msra.mxu0 0.0
    %1869 = vmatprep.subr.mxu0 0.0
    %1870 = vmatpush1.msra.mxu0 0.0
    %1871 = vmatprep.subr.mxu0 0.0
    %1872 = vmatpush1.msra.mxu0 0.0
    %1873 = vmatprep.subr.mxu0 0.0
    %1874 = vmatpush1.msra.mxu0 0.0
    %1875 = vmatprep.subr.mxu0 0.0
    %1876 = vmatpush1.msra.mxu0 0.0
    %1877 = vmatprep.subr.mxu0 0.0
    %1878 = vmatpush1.msra.mxu0 0.0
    %1879 = vmatprep.subr.mxu0 0.0
    %1880 = vmatpush1.msra.mxu0 0.0
    %1881 = vmatprep.subr.mxu0 0.0
    %1882 = vmatpush1.msra.mxu0 0.0
    %1883 = vmatprep.subr.mxu0 0.0
    %1884 = vmatpush1.msra.mxu0 0.0
    %1885 = vmatprep.subr.mxu0 0.0
    %1886 = vmatpush1.msra.mxu0 0.0
    %1887 = vmatprep.subr.mxu0 0.0
    %1888 = vmatpush1.msra.mxu0 0.0
    %1889 = vmatprep.subr.mxu0 0.0
    %1890 = vmatpush1.msra.mxu0 0.0
    %1891 = vmatprep.subr.mxu0 0.0
    %1892 = vmatpush1.msra.mxu0 0.0
    %1893 = vmatprep.subr.mxu0 0.0
    %1894 = vmatpush1.msra.mxu0 0.0
    %1895 = vmatprep.subr.mxu0 0.0
    %1896 = vmatpush1.msra.mxu0 0.0
    %1897 = vmatprep.subr.mxu0 0.0
    %1898 = vmatpush1.msra.mxu0 0.0
    %1899 = vmatprep.subr.mxu0 0.0
    %1900 = vmatpush1.msra.mxu0 0.0
    %1901 = vmatprep.subr.mxu0 0.0
    %1902 = vmatpush1.msra.mxu0 0.0
    %1903 = vmatprep.subr.mxu0 0.0
    %1904 = vmatpush1.msra.mxu0 0.0
    %1905 = vmatprep.subr.mxu0 0.0
    %1906 = vmatpush1.msra.mxu0 0.0
    %1907 = vmatprep.subr.mxu0 0.0
    %1908 = vmatpush1.msra.mxu0 0.0
    %1909 = vmatprep.subr.mxu0 0.0
    %1910 = vmatpush1.msra.mxu0 0.0
    %1911 = vmatprep.subr.mxu0 0.0
    %1912 = vmatpush1.msra.mxu0 0.0
    %1913 = vmatprep.subr.mxu0 0.0
    %1914 = vmatpush1.msra.mxu0 0.0
    %1915 = vmatprep.subr.mxu0 0.0
    %1916 = vmatpush1.msra.mxu0 0.0
    %1917 = vmatprep.subr.mxu0 0.0
    %1918 = vmatpush1.msra.mxu0 0.0
    %1919 = vmatprep.subr.mxu0 0.0
    %1920 = vmatpush1.msra.mxu0 0.0
    %1921 = vmatprep.subr.mxu0 0.0
    %1922 = vmatpush1.msra.mxu0 0.0
    %1923 = vmatprep.subr.mxu0 0.0
    %1924 = vmatpush1.msra.mxu0 0.0
    %1925 = vmatprep.subr.mxu0 0.0
    %1926 = vmatpush1.msra.mxu0 0.0
    %1927 = vmatprep.mubr.f32.mxu0 0.0
    %1928 = vmatmul.mubr.f32.gmra.mrb[0].mxu0 %v1861
    %v1929 = vpop.f32.mrb[0].mxu0
    %v1930 = vadd.f32 0.0, %v1929
    %v1931 = vpop.f32.mrb[0].mxu0
    %1932 = vdwg.mxu0
    %v1934 = vsel %vm1017, %v1709, 0
    %1936 = vmatprep.subr.mxu0 0.0
    %1937 = vmatpush1.msra.mxu0 %v858
    %1938 = vmatprep.subr.mxu0 0.0
    %1939 = vmatpush1.msra.mxu0 0.0
    %1940 = vmatprep.subr.mxu0 0.0
    %1941 = vmatpush1.msra.mxu0 0.0
    %1942 = vmatprep.subr.mxu0 0.0
    %1943 = vmatpush1.msra.mxu0 0.0
    %1944 = vmatprep.subr.mxu0 0.0
    %1945 = vmatpush1.msra.mxu0 0.0
    %1946 = vmatprep.subr.mxu0 0.0
    %1947 = vmatpush1.msra.mxu0 0.0
    %1948 = vmatprep.subr.mxu0 0.0
    %1949 = vmatpush1.msra.mxu0 0.0
    %1950 = vmatprep.subr.mxu0 0.0
    %1951 = vmatpush1.msra.mxu0 0.0
    %1952 = vmatprep.subr.mxu0 0.0
    %1953 = vmatpush1.msra.mxu0 0.0
    %1954 = vmatprep.subr.mxu0 0.0
    %1955 = vmatpush1.msra.mxu0 0.0
    %1956 = vmatprep.subr.mxu0 0.0
    %1957 = vmatpush1.msra.mxu0 0.0
    %1958 = vmatprep.subr.mxu0 0.0
    %1959 = vmatpush1.msra.mxu0 0.0
    %1960 = vmatprep.subr.mxu0 0.0
    %1961 = vmatpush1.msra.mxu0 0.0
    %1962 = vmatprep.subr.mxu0 0.0
    %1963 = vmatpush1.msra.mxu0 0.0
    %1964 = vmatprep.subr.mxu0 0.0
    %1965 = vmatpush1.msra.mxu0 0.0
    %1966 = vmatprep.subr.mxu0 0.0
    %1967 = vmatpush1.msra.mxu0 0.0
    %1968 = vmatprep.subr.mxu0 0.0
    %1969 = vmatpush1.msra.mxu0 0.0
    %1970 = vmatprep.subr.mxu0 0.0
    %1971 = vmatpush1.msra.mxu0 0.0
    %1972 = vmatprep.subr.mxu0 0.0
    %1973 = vmatpush1.msra.mxu0 0.0
    %1974 = vmatprep.subr.mxu0 0.0
    %1975 = vmatpush1.msra.mxu0 0.0
    %1976 = vmatprep.subr.mxu0 0.0
    %1977 = vmatpush1.msra.mxu0 0.0
    %1978 = vmatprep.subr.mxu0 0.0
    %1979 = vmatpush1.msra.mxu0 0.0
    %1980 = vmatprep.subr.mxu0 0.0
    %1981 = vmatpush1.msra.mxu0 0.0
    %1982 = vmatprep.subr.mxu0 0.0
    %1983 = vmatpush1.msra.mxu0 0.0
    %1984 = vmatprep.subr.mxu0 0.0
    %1985 = vmatpush1.msra.mxu0 0.0
    %1986 = vmatprep.subr.mxu0 0.0
    %1987 = vmatpush1.msra.mxu0 0.0
    %1988 = vmatprep.subr.mxu0 0.0
    %1989 = vmatpush1.msra.mxu0 0.0
    %1990 = vmatprep.subr.mxu0 0.0
    %1991 = vmatpush1.msra.mxu0 0.0
    %1992 = vmatprep.subr.mxu0 0.0
    %1993 = vmatpush1.msra.mxu0 0.0
    %1994 = vmatprep.subr.mxu0 0.0
    %1995 = vmatpush1.msra.mxu0 0.0
    %1996 = vmatprep.subr.mxu0 0.0
    %1997 = vmatpush1.msra.mxu0 0.0
    %1998 = vmatprep.subr.mxu0 0.0
    %1999 = vmatpush1.msra.mxu0 0.0
    %2000 = vmatprep.mubr.f32.mxu0 0.0
    %2001 = vmatmul.mubr.f32.gmra.mrb[0].mxu0 %v1934
    %v2002 = vpop.f32.mrb[0].mxu0
    %v2003 = vadd.f32 0.0, %v2002
    %v2004 = vpop.f32.mrb[0].mxu0
    %2005 = vdwg.mxu0
    %v2007 = vsel %vm1017, %v1710, 0
    %2009 = vmatprep.subr.mxu0 0.0
    %2010 = vmatpush1.msra.mxu0 %v931
    %2011 = vmatprep.subr.mxu0 0.0
    %2012 = vmatpush1.msra.mxu0 0.0
    %2013 = vmatprep.subr.mxu0 0.0
    %2014 = vmatpush1.msra.mxu0 0.0
    %2015 = vmatprep.subr.mxu0 0.0
    %2016 = vmatpush1.msra.mxu0 0.0
    %2017 = vmatprep.subr.mxu0 0.0
    %2018 = vmatpush1.msra.mxu0 0.0
    %2019 = vmatprep.subr.mxu0 0.0
    %2020 = vmatpush1.msra.mxu0 0.0
    %2021 = vmatprep.subr.mxu0 0.0
    %2022 = vmatpush1.msra.mxu0 0.0
    %2023 = vmatprep.subr.mxu0 0.0
    %2024 = vmatpush1.msra.mxu0 0.0
    %2025 = vmatprep.subr.mxu0 0.0
    %2026 = vmatpush1.msra.mxu0 0.0
    %2027 = vmatprep.subr.mxu0 0.0
    %2028 = vmatpush1.msra.mxu0 0.0
    %2029 = vmatprep.subr.mxu0 0.0
    %2030 = vmatpush1.msra.mxu0 0.0
    %2031 = vmatprep.subr.mxu0 0.0
    %2032 = vmatpush1.msra.mxu0 0.0
    %2033 = vmatprep.subr.mxu0 0.0
    %2034 = vmatpush1.msra.mxu0 0.0
    %2035 = vmatprep.subr.mxu0 0.0
    %2036 = vmatpush1.msra.mxu0 0.0
    %2037 = vmatprep.subr.mxu0 0.0
    %2038 = vmatpush1.msra.mxu0 0.0
    %2039 = vmatprep.subr.mxu0 0.0
    %2040 = vmatpush1.msra.mxu0 0.0
    %2041 = vmatprep.subr.mxu0 0.0
    %2042 = vmatpush1.msra.mxu0 0.0
    %2043 = vmatprep.subr.mxu0 0.0
    %2044 = vmatpush1.msra.mxu0 0.0
    %2045 = vmatprep.subr.mxu0 0.0
    %2046 = vmatpush1.msra.mxu0 0.0
    %2047 = vmatprep.subr.mxu0 0.0
    %2048 = vmatpush1.msra.mxu0 0.0
    %2049 = vmatprep.subr.mxu0 0.0
    %2050 = vmatpush1.msra.mxu0 0.0
    %2051 = vmatprep.subr.mxu0 0.0
    %2052 = vmatpush1.msra.mxu0 0.0
    %2053 = vmatprep.subr.mxu0 0.0
    %2054 = vmatpush1.msra.mxu0 0.0
    %2055 = vmatprep.subr.mxu0 0.0
    %2056 = vmatpush1.msra.mxu0 0.0
    %2057 = vmatprep.subr.mxu0 0.0
    %2058 = vmatpush1.msra.mxu0 0.0
    %2059 = vmatprep.subr.mxu0 0.0
    %2060 = vmatpush1.msra.mxu0 0.0
    %2061 = vmatprep.subr.mxu0 0.0
    %2062 = vmatpush1.msra.mxu0 0.0
    %2063 = vmatprep.subr.mxu0 0.0
    %2064 = vmatpush1.msra.mxu0 0.0
    %2065 = vmatprep.subr.mxu0 0.0
    %2066 = vmatpush1.msra.mxu0 0.0
    %2067 = vmatprep.subr.mxu0 0.0
    %2068 = vmatpush1.msra.mxu0 0.0
    %2069 = vmatprep.subr.mxu0 0.0
    %2070 = vmatpush1.msra.mxu0 0.0
    %2071 = vmatprep.subr.mxu0 0.0
    %2072 = vmatpush1.msra.mxu0 0.0
    %2073 = vmatprep.mubr.f32.mxu0 0.0
    %2074 = vmatmul.mubr.f32.gmra.mrb[0].mxu0 %v2007
    %v2075 = vpop.f32.mrb[0].mxu0
    %v2076 = vadd.f32 0.0, %v2075
    %v2077 = vpop.f32.mrb[0].mxu0
    %2078 = vdwg.mxu0
    %v2080 = vsel %vm1017, %v1711, 0
    %2082 = vmatprep.subr.mxu0 0.0
    %2083 = vmatpush1.msra.mxu0 %v936
    %2084 = vmatprep.subr.mxu0 0.0
    %2085 = vmatpush1.msra.mxu0 0.0
    %2086 = vmatprep.subr.mxu0 0.0
    %2087 = vmatpush1.msra.mxu0 0.0
    %2088 = vmatprep.subr.mxu0 0.0
    %2089 = vmatpush1.msra.mxu0 0.0
    %2090 = vmatprep.subr.mxu0 0.0
    %2091 = vmatpush1.msra.mxu0 0.0
    %2092 = vmatprep.subr.mxu0 0.0
    %2093 = vmatpush1.msra.mxu0 0.0
    %2094 = vmatprep.subr.mxu0 0.0
    %2095 = vmatpush1.msra.mxu0 0.0
    %2096 = vmatprep.subr.mxu0 0.0
    %2097 = vmatpush1.msra.mxu0 0.0
    %2098 = vmatprep.subr.mxu0 0.0
    %2099 = vmatpush1.msra.mxu0 0.0
    %2100 = vmatprep.subr.mxu0 0.0
    %2101 = vmatpush1.msra.mxu0 0.0
    %2102 = vmatprep.subr.mxu0 0.0
    %2103 = vmatpush1.msra.mxu0 0.0
    %2104 = vmatprep.subr.mxu0 0.0
    %2105 = vmatpush1.msra.mxu0 0.0
    %2106 = vmatprep.subr.mxu0 0.0
    %2107 = vmatpush1.msra.mxu0 0.0
    %2108 = vmatprep.subr.mxu0 0.0
    %2109 = vmatpush1.msra.mxu0 0.0
    %2110 = vmatprep.subr.mxu0 0.0
    %2111 = vmatpush1.msra.mxu0 0.0
    %2112 = vmatprep.subr.mxu0 0.0
    %2113 = vmatpush1.msra.mxu0 0.0
    %2114 = vmatprep.subr.mxu0 0.0
    %2115 = vmatpush1.msra.mxu0 0.0
    %2116 = vmatprep.subr.mxu0 0.0
    %2117 = vmatpush1.msra.mxu0 0.0
    %2118 = vmatprep.subr.mxu0 0.0
    %2119 = vmatpush1.msra.mxu0 0.0
    %2120 = vmatprep.subr.mxu0 0.0
    %2121 = vmatpush1.msra.mxu0 0.0
    %2122 = vmatprep.subr.mxu0 0.0
    %2123 = vmatpush1.msra.mxu0 0.0
    %2124 = vmatprep.subr.mxu0 0.0
    %2125 = vmatpush1.msra.mxu0 0.0
    %2126 = vmatprep.subr.mxu0 0.0
    %2127 = vmatpush1.msra.mxu0 0.0
    %2128 = vmatprep.subr.mxu0 0.0
    %2129 = vmatpush1.msra.mxu0 0.0
    %2130 = vmatprep.subr.mxu0 0.0
    %2131 = vmatpush1.msra.mxu0 0.0
    %2132 = vmatprep.subr.mxu0 0.0
    %2133 = vmatpush1.msra.mxu0 0.0
    %2134 = vmatprep.subr.mxu0 0.0
    %2135 = vmatpush1.msra.mxu0 0.0
    %2136 = vmatprep.subr.mxu0 0.0
    %2137 = vmatpush1.msra.mxu0 0.0
    %2138 = vmatprep.subr.mxu0 0.0
    %2139 = vmatpush1.msra.mxu0 0.0
    %2140 = vmatprep.subr.mxu0 0.0
    %2141 = vmatpush1.msra.mxu0 0.0
    %2142 = vmatprep.subr.mxu0 0.0
    %2143 = vmatpush1.msra.mxu0 0.0
    %2144 = vmatprep.subr.mxu0 0.0
    %2145 = vmatpush1.msra.mxu0 0.0
    %2146 = vmatprep.mubr.f32.mxu0 0.0
    %2147 = vmatmul.mubr.f32.gmra.mrb[0].mxu0 %v2080
    %v2148 = vpop.f32.mrb[0].mxu0
    %v2149 = vadd.f32 0.0, %v2148
    %v2150 = vpop.f32.mrb[0].mxu0
    %2151 = vdwg.mxu0
    %v2153 = vsel %vm1017, %v1712, 0
    %2155 = vmatprep.subr.mxu0 0.0
    %2156 = vmatpush1.msra.mxu0 %v1009
    %2157 = vmatprep.subr.mxu0 0.0
    %2158 = vmatpush1.msra.mxu0 0.0
    %2159 = vmatprep.subr.mxu0 0.0
    %2160 = vmatpush1.msra.mxu0 0.0
    %2161 = vmatprep.subr.mxu0 0.0
    %2162 = vmatpush1.msra.mxu0 0.0
    %2163 = vmatprep.subr.mxu0 0.0
    %2164 = vmatpush1.msra.mxu0 0.0
    %2165 = vmatprep.subr.mxu0 0.0
    %2166 = vmatpush1.msra.mxu0 0.0
    %2167 = vmatprep.subr.mxu0 0.0
    %2168 = vmatpush1.msra.mxu0 0.0
    %2169 = vmatprep.subr.mxu0 0.0
    %2170 = vmatpush1.msra.mxu0 0.0
    %2171 = vmatprep.subr.mxu0 0.0
    %2172 = vmatpush1.msra.mxu0 0.0
    %2173 = vmatprep.subr.mxu0 0.0
    %2174 = vmatpush1.msra.mxu0 0.0
    %2175 = vmatprep.subr.mxu0 0.0
    %2176 = vmatpush1.msra.mxu0 0.0
    %2177 = vmatprep.subr.mxu0 0.0
    %2178 = vmatpush1.msra.mxu0 0.0
    %2179 = vmatprep.subr.mxu0 0.0
    %2180 = vmatpush1.msra.mxu0 0.0
    %2181 = vmatprep.subr.mxu0 0.0
    %2182 = vmatpush1.msra.mxu0 0.0
    %2183 = vmatprep.subr.mxu0 0.0
    %2184 = vmatpush1.msra.mxu0 0.0
    %2185 = vmatprep.subr.mxu0 0.0
    %2186 = vmatpush1.msra.mxu0 0.0
    %2187 = vmatprep.subr.mxu0 0.0
    %2188 = vmatpush1.msra.mxu0 0.0
    %2189 = vmatprep.subr.mxu0 0.0
    %2190 = vmatpush1.msra.mxu0 0.0
    %2191 = vmatprep.subr.mxu0 0.0
    %2192 = vmatpush1.msra.mxu0 0.0
    %2193 = vmatprep.subr.mxu0 0.0
    %2194 = vmatpush1.msra.mxu0 0.0
    %2195 = vmatprep.subr.mxu0 0.0
    %2196 = vmatpush1.msra.mxu0 0.0
    %2197 = vmatprep.subr.mxu0 0.0
    %2198 = vmatpush1.msra.mxu0 0.0
    %2199 = vmatprep.subr.mxu0 0.0
    %2200 = vmatpush1.msra.mxu0 0.0
    %2201 = vmatprep.subr.mxu0 0.0
    %2202 = vmatpush1.msra.mxu0 0.0
    %2203 = vmatprep.subr.mxu0 0.0
    %2204 = vmatpush1.msra.mxu0 0.0
    %2205 = vmatprep.subr.mxu0 0.0
    %2206 = vmatpush1.msra.mxu0 0.0
    %2207 = vmatprep.subr.mxu0 0.0
    %2208 = vmatpush1.msra.mxu0 0.0
    %2209 = vmatprep.subr.mxu0 0.0
    %2210 = vmatpush1.msra.mxu0 0.0
    %2211 = vmatprep.subr.mxu0 0.0
    %2212 = vmatpush1.msra.mxu0 0.0
    %2213 = vmatprep.subr.mxu0 0.0
    %2214 = vmatpush1.msra.mxu0 0.0
    %2215 = vmatprep.subr.mxu0 0.0
    %2216 = vmatpush1.msra.mxu0 0.0
    %2217 = vmatprep.subr.mxu0 0.0
    %2218 = vmatpush1.msra.mxu0 0.0
    %2219 = vmatprep.mubr.f32.mxu0 0.0
    %2220 = vmatmul.mubr.f32.gmra.mrb[0].mxu0 %v2153
    %v2221 = vpop.f32.mrb[0].mxu0
    %v2222 = vadd.f32 0.0, %v2221
    %v2223 = vpop.f32.mrb[0].mxu0
    %2224 = vdwg.mxu0
    %v2226 = vsel %vm1017, %v1713, 0
    %2228 = vmatprep.subr.mxu0 0.0
    %2229 = vmatpush1.msra.mxu0 %v1014
    %2230 = vmatprep.subr.mxu0 0.0
    %2231 = vmatpush1.msra.mxu0 0.0
    %2232 = vmatprep.subr.mxu0 0.0
    %2233 = vmatpush1.msra.mxu0 0.0
    %2234 = vmatprep.subr.mxu0 0.0
    %2235 = vmatpush1.msra.mxu0 0.0
    %2236 = vmatprep.subr.mxu0 0.0
    %2237 = vmatpush1.msra.mxu0 0.0
    %2238 = vmatprep.subr.mxu0 0.0
    %2239 = vmatpush1.msra.mxu0 0.0
    %2240 = vmatprep.subr.mxu0 0.0
    %2241 = vmatpush1.msra.mxu0 0.0
    %2242 = vmatprep.subr.mxu0 0.0
    %2243 = vmatpush1.msra.mxu0 0.0
    %2244 = vmatprep.subr.mxu0 0.0
    %2245 = vmatpush1.msra.mxu0 0.0
    %2246 = vmatprep.subr.mxu0 0.0
    %2247 = vmatpush1.msra.mxu0 0.0
    %2248 = vmatprep.subr.mxu0 0.0
    %2249 = vmatpush1.msra.mxu0 0.0
    %2250 = vmatprep.subr.mxu0 0.0
    %2251 = vmatpush1.msra.mxu0 0.0
    %2252 = vmatprep.subr.mxu0 0.0
    %2253 = vmatpush1.msra.mxu0 0.0
    %2254 = vmatprep.subr.mxu0 0.0
    %2255 = vmatpush1.msra.mxu0 0.0
    %2256 = vmatprep.subr.mxu0 0.0
    %2257 = vmatpush1.msra.mxu0 0.0
    %2258 = vmatprep.subr.mxu0 0.0
    %2259 = vmatpush1.msra.mxu0 0.0
    %2260 = vmatprep.subr.mxu0 0.0
    %2261 = vmatpush1.msra.mxu0 0.0
    %2262 = vmatprep.subr.mxu0 0.0
    %2263 = vmatpush1.msra.mxu0 0.0
    %2264 = vmatprep.subr.mxu0 0.0
    %2265 = vmatpush1.msra.mxu0 0.0
    %2266 = vmatprep.subr.mxu0 0.0
    %2267 = vmatpush1.msra.mxu0 0.0
    %2268 = vmatprep.subr.mxu0 0.0
    %2269 = vmatpush1.msra.mxu0 0.0
    %2270 = vmatprep.subr.mxu0 0.0
    %2271 = vmatpush1.msra.mxu0 0.0
    %2272 = vmatprep.subr.mxu0 0.0
    %2273 = vmatpush1.msra.mxu0 0.0
    %2274 = vmatprep.subr.mxu0 0.0
    %2275 = vmatpush1.msra.mxu0 0.0
    %2276 = vmatprep.subr.mxu0 0.0
    %2277 = vmatpush1.msra.mxu0 0.0
    %2278 = vmatprep.subr.mxu0 0.0
    %2279 = vmatpush1.msra.mxu0 0.0
    %2280 = vmatprep.subr.mxu0 0.0
    %2281 = vmatpush1.msra.mxu0 0.0
    %2282 = vmatprep.subr.mxu0 0.0
    %2283 = vmatpush1.msra.mxu0 0.0
    %2284 = vmatprep.subr.mxu0 0.0
    %2285 = vmatpush1.msra.mxu0 0.0
    %2286 = vmatprep.subr.mxu0 0.0
    %2287 = vmatpush1.msra.mxu0 0.0
    %2288 = vmatprep.subr.mxu0 0.0
    %2289 = vmatpush1.msra.mxu0 0.0
    %2290 = vmatprep.subr.mxu0 0.0
    %2291 = vmatpush1.msra.mxu0 0.0
    %2292 = vmatprep.mubr.f32.mxu0 0.0
    %2293 = vmatmul.mubr.f32.gmra.mrb[0].mxu0 %v2226
    %v2294 = vpop.f32.mrb[0].mxu0
    %v2295 = vadd.f32 0.0, %v2294
    %v2296 = vpop.f32.mrb[0].mxu0
    %2297 = vdwg.mxu0
    %v2299 = vsel %vm1017, %v1784, 0
    %v2302 = vsel %vm1017, %v1857, 0
    %2304 = vmatprep.subr.mxu0 0.0
    %2305 = vmatpush1.msra.mxu0 %v50
    %2306 = vmatprep.subr.mxu0 0.0
    %2307 = vmatpush1.msra.mxu0 0.0
    %2308 = vmatprep.subr.mxu0 0.0
    %2309 = vmatpush1.msra.mxu0 0.0
    %2310 = vmatprep.subr.mxu0 0.0
    %2311 = vmatpush1.msra.mxu0 0.0
    %2312 = vmatprep.subr.mxu0 0.0
    %2313 = vmatpush1.msra.mxu0 0.0
    %2314 = vmatprep.subr.mxu0 0.0
    %2315 = vmatpush1.msra.mxu0 0.0
    %2316 = vmatprep.subr.mxu0 0.0
    %2317 = vmatpush1.msra.mxu0 0.0
    %2318 = vmatprep.subr.mxu0 0.0
    %2319 = vmatpush1.msra.mxu0 0.0
    %2320 = vmatprep.subr.mxu0 0.0
    %2321 = vmatpush1.msra.mxu0 0.0
    %2322 = vmatprep.subr.mxu0 0.0
    %2323 = vmatpush1.msra.mxu0 0.0
    %2324 = vmatprep.subr.mxu0 0.0
    %2325 = vmatpush1.msra.mxu0 0.0
    %2326 = vmatprep.subr.mxu0 0.0
    %2327 = vmatpush1.msra.mxu0 0.0
    %2328 = vmatprep.subr.mxu0 0.0
    %2329 = vmatpush1.msra.mxu0 0.0
    %2330 = vmatprep.subr.mxu0 0.0
    %2331 = vmatpush1.msra.mxu0 0.0
    %2332 = vmatprep.subr.mxu0 0.0
    %2333 = vmatpush1.msra.mxu0 0.0
    %2334 = vmatprep.subr.mxu0 0.0
    %2335 = vmatpush1.msra.mxu0 0.0
    %2336 = vmatprep.subr.mxu0 0.0
    %2337 = vmatpush1.msra.mxu0 0.0
    %2338 = vmatprep.subr.mxu0 0.0
    %2339 = vmatpush1.msra.mxu0 0.0
    %2340 = vmatprep.subr.mxu0 0.0
    %2341 = vmatpush1.msra.mxu0 0.0
    %2342 = vmatprep.subr.mxu0 0.0
    %2343 = vmatpush1.msra.mxu0 0.0
    %2344 = vmatprep.subr.mxu0 0.0
    %2345 = vmatpush1.msra.mxu0 0.0
    %2346 = vmatprep.subr.mxu0 0.0
    %2347 = vmatpush1.msra.mxu0 0.0
    %2348 = vmatprep.subr.mxu0 0.0
    %2349 = vmatpush1.msra.mxu0 0.0
    %2350 = vmatprep.subr.mxu0 0.0
    %2351 = vmatpush1.msra.mxu0 0.0
    %2352 = vmatprep.subr.mxu0 0.0
    %2353 = vmatpush1.msra.mxu0 0.0
    %2354 = vmatprep.subr.mxu0 0.0
    %2355 = vmatpush1.msra.mxu0 0.0
    %2356 = vmatprep.subr.mxu0 0.0
    %2357 = vmatpush1.msra.mxu0 0.0
    %2358 = vmatprep.subr.mxu0 0.0
    %2359 = vmatpush1.msra.mxu0 0.0
    %2360 = vmatprep.subr.mxu0 0.0
    %2361 = vmatpush1.msra.mxu0 0.0
    %2362 = vmatprep.subr.mxu0 0.0
    %2363 = vmatpush1.msra.mxu0 0.0
    %2364 = vmatprep.subr.mxu0 0.0
    %2365 = vmatpush1.msra.mxu0 0.0
    %2366 = vmatprep.subr.mxu0 0.0
    %2367 = vmatpush1.msra.mxu0 0.0
    %2368 = vmatprep.mubr.f32.mxu0 0.0
    %2369 = vmatmul.mubr.f32.gmra.mrb[0].mxu0 %v2299
    %v2370 = vpop.f32.mrb[0].mxu0
    %v2371 = vadd.f32 0.0, %v2370
    %v2372 = vpop.f32.mrb[0].mxu0
    %2373 = vmatprep.mubr.f32.mxu0 0.0
    %2374 = vmatmul.mubr.f32.gmra.mrb[0].mxu0 %v2302
    %v2375 = vpop.f32.mrb[0].mxu0
    %v2376 = vadd.f32 0.0, %v2375
    %v2377 = vpop.f32.mrb[0].mxu0
    %2378 = vdwg.mxu0
    %v2380 = vsel %vm1017, %v1930, 0
    %v2383 = vsel %vm1017, %v2003, 0
    %2385 = vmatprep.subr.mxu0 0.0
    %2386 = vmatpush1.msra.mxu0 %v51
    %2387 = vmatprep.subr.mxu0 0.0
    %2388 = vmatpush1.msra.mxu0 0.0
    %2389 = vmatprep.subr.mxu0 0.0
    %2390 = vmatpush1.msra.mxu0 0.0
    %2391 = vmatprep.subr.mxu0 0.0
    %2392 = vmatpush1.msra.mxu0 0.0
    %2393 = vmatprep.subr.mxu0 0.0
    %2394 = vmatpush1.msra.mxu0 0.0
    %2395 = vmatprep.subr.mxu0 0.0
    %2396 = vmatpush1.msra.mxu0 0.0
    %2397 = vmatprep.subr.mxu0 0.0
    %2398 = vmatpush1.msra.mxu0 0.0
    %2399 = vmatprep.subr.mxu0 0.0
    %2400 = vmatpush1.msra.mxu0 0.0
    %2401 = vmatprep.subr.mxu0 0.0
    %2402 = vmatpush1.msra.mxu0 0.0
    %2403 = vmatprep.subr.mxu0 0.0
    %2404 = vmatpush1.msra.mxu0 0.0
    %2405 = vmatprep.subr.mxu0 0.0
    %2406 = vmatpush1.msra.mxu0 0.0
    %2407 = vmatprep.subr.mxu0 0.0
    %2408 = vmatpush1.msra.mxu0 0.0
    %2409 = vmatprep.subr.mxu0 0.0
    %2410 = vmatpush1.msra.mxu0 0.0
    %2411 = vmatprep.subr.mxu0 0.0
    %2412 = vmatpush1.msra.mxu0 0.0
    %2413 = vmatprep.subr.mxu0 0.0
    %2414 = vmatpush1.msra.mxu0 0.0
    %2415 = vmatprep.subr.mxu0 0.0
    %2416 = vmatpush1.msra.mxu0 0.0
    %2417 = vmatprep.subr.mxu0 0.0
    %2418 = vmatpush1.msra.mxu0 0.0
    %2419 = vmatprep.subr.mxu0 0.0
    %2420 = vmatpush1.msra.mxu0 0.0
    %2421 = vmatprep.subr.mxu0 0.0
    %2422 = vmatpush1.msra.mxu0 0.0
    %2423 = vmatprep.subr.mxu0 0.0
    %2424 = vmatpush1.msra.mxu0 0.0
    %2425 = vmatprep.subr.mxu0 0.0
    %2426 = vmatpush1.msra.mxu0 0.0
    %2427 = vmatprep.subr.mxu0 0.0
    %2428 = vmatpush1.msra.mxu0 0.0
    %2429 = vmatprep.subr.mxu0 0.0
    %2430 = vmatpush1.msra.mxu0 0.0
    %2431 = vmatprep.subr.mxu0 0.0
    %2432 = vmatpush1.msra.mxu0 0.0
    %2433 = vmatprep.subr.mxu0 0.0
    %2434 = vmatpush1.msra.mxu0 0.0
    %2435 = vmatprep.subr.mxu0 0.0
    %2436 = vmatpush1.msra.mxu0 0.0
    %2437 = vmatprep.subr.mxu0 0.0
    %2438 = vmatpush1.msra.mxu0 0.0
    %2439 = vmatprep.subr.mxu0 0.0
    %2440 = vmatpush1.msra.mxu0 0.0
    %2441 = vmatprep.subr.mxu0 0.0
    %2442 = vmatpush1.msra.mxu0 0.0
    %2443 = vmatprep.subr.mxu0 0.0
    %2444 = vmatpush1.msra.mxu0 0.0
    %2445 = vmatprep.subr.mxu0 0.0
    %2446 = vmatpush1.msra.mxu0 0.0
    %2447 = vmatprep.subr.mxu0 0.0
    %2448 = vmatpush1.msra.mxu0 0.0
    %2449 = vmatprep.mubr.f32.mxu0 0.0
    %2450 = vmatmul.mubr.f32.gmra.mrb[0].mxu0 %v2380
    %v2451 = vpop.f32.mrb[0].mxu0
    %v2452 = vadd.f32 0.0, %v2451
    %v2453 = vpop.f32.mrb[0].mxu0
    %2454 = vmatprep.mubr.f32.mxu0 0.0
    %2455 = vmatmul.mubr.f32.gmra.mrb[0].mxu0 %v2383
    %v2456 = vpop.f32.mrb[0].mxu0
    %v2457 = vadd.f32 0.0, %v2456
    %v2458 = vpop.f32.mrb[0].mxu0
    %2459 = vdwg.mxu0
    %v2461 = vsel %vm1017, %v2076, 0
    %v2464 = vsel %vm1017, %v2149, 0
    %2466 = vmatprep.subr.mxu0 0.0
    %2467 = vmatpush1.msra.mxu0 %v52
    %2468 = vmatprep.subr.mxu0 0.0
    %2469 = vmatpush1.msra.mxu0 0.0
    %2470 = vmatprep.subr.mxu0 0.0
    %2471 = vmatpush1.msra.mxu0 0.0
    %2472 = vmatprep.subr.mxu0 0.0
    %2473 = vmatpush1.msra.mxu0 0.0
    %2474 = vmatprep.subr.mxu0 0.0
    %2475 = vmatpush1.msra.mxu0 0.0
    %2476 = vmatprep.subr.mxu0 0.0
    %2477 = vmatpush1.msra.mxu0 0.0
    %2478 = vmatprep.subr.mxu0 0.0
    %2479 = vmatpush1.msra.mxu0 0.0
    %2480 = vmatprep.subr.mxu0 0.0
    %2481 = vmatpush1.msra.mxu0 0.0
    %2482 = vmatprep.subr.mxu0 0.0
    %2483 = vmatpush1.msra.mxu0 0.0
    %2484 = vmatprep.subr.mxu0 0.0
    %2485 = vmatpush1.msra.mxu0 0.0
    %2486 = vmatprep.subr.mxu0 0.0
    %2487 = vmatpush1.msra.mxu0 0.0
    %2488 = vmatprep.subr.mxu0 0.0
    %2489 = vmatpush1.msra.mxu0 0.0
    %2490 = vmatprep.subr.mxu0 0.0
    %2491 = vmatpush1.msra.mxu0 0.0
    %2492 = vmatprep.subr.mxu0 0.0
    %2493 = vmatpush1.msra.mxu0 0.0
    %2494 = vmatprep.subr.mxu0 0.0
    %2495 = vmatpush1.msra.mxu0 0.0
    %2496 = vmatprep.subr.mxu0 0.0
    %2497 = vmatpush1.msra.mxu0 0.0
    %2498 = vmatprep.subr.mxu0 0.0
    %2499 = vmatpush1.msra.mxu0 0.0
    %2500 = vmatprep.subr.mxu0 0.0
    %2501 = vmatpush1.msra.mxu0 0.0
    %2502 = vmatprep.subr.mxu0 0.0
    %2503 = vmatpush1.msra.mxu0 0.0
    %2504 = vmatprep.subr.mxu0 0.0
    %2505 = vmatpush1.msra.mxu0 0.0
    %2506 = vmatprep.subr.mxu0 0.0
    %2507 = vmatpush1.msra.mxu0 0.0
    %2508 = vmatprep.subr.mxu0 0.0
    %2509 = vmatpush1.msra.mxu0 0.0
    %2510 = vmatprep.subr.mxu0 0.0
    %2511 = vmatpush1.msra.mxu0 0.0
    %2512 = vmatprep.subr.mxu0 0.0
    %2513 = vmatpush1.msra.mxu0 0.0
    %2514 = vmatprep.subr.mxu0 0.0
    %2515 = vmatpush1.msra.mxu0 0.0
    %2516 = vmatprep.subr.mxu0 0.0
    %2517 = vmatpush1.msra.mxu0 0.0
    %2518 = vmatprep.subr.mxu0 0.0
    %2519 = vmatpush1.msra.mxu0 0.0
    %2520 = vmatprep.subr.mxu0 0.0
    %2521 = vmatpush1.msra.mxu0 0.0
    %2522 = vmatprep.subr.mxu0 0.0
    %2523 = vmatpush1.msra.mxu0 0.0
    %2524 = vmatprep.subr.mxu0 0.0
    %2525 = vmatpush1.msra.mxu0 0.0
    %2526 = vmatprep.subr.mxu0 0.0
    %2527 = vmatpush1.msra.mxu0 0.0
    %2528 = vmatprep.subr.mxu0 0.0
    %2529 = vmatpush1.msra.mxu0 0.0
    %2530 = vmatprep.mubr.f32.mxu0 0.0
    %2531 = vmatmul.mubr.f32.gmra.mrb[0].mxu0 %v2461
    %v2532 = vpop.f32.mrb[0].mxu0
    %v2533 = vadd.f32 0.0, %v2532
    %v2534 = vpop.f32.mrb[0].mxu0
    %2535 = vmatprep.mubr.f32.mxu0 0.0
    %2536 = vmatmul.mubr.f32.gmra.mrb[0].mxu0 %v2464
    %v2537 = vpop.f32.mrb[0].mxu0
    %v2538 = vadd.f32 0.0, %v2537
    %v2539 = vpop.f32.mrb[0].mxu0
    %2540 = vdwg.mxu0
    %v2542 = vsel %vm1017, %v2222, 0
    %v2545 = vsel %vm1017, %v2295, 0
    %2547 = vmatprep.subr.mxu0 0.0
    %2548 = vmatpush1.msra.mxu0 %v53
    %2549 = vmatprep.subr.mxu0 0.0
    %2550 = vmatpush1.msra.mxu0 0.0
    %2551 = vmatprep.subr.mxu0 0.0
    %2552 = vmatpush1.msra.mxu0 0.0
    %2553 = vmatprep.subr.mxu0 0.0
    %2554 = vmatpush1.msra.mxu0 0.0
    %2555 = vmatprep.subr.mxu0 0.0
    %2556 = vmatpush1.msra.mxu0 0.0
    %2557 = vmatprep.subr.mxu0 0.0
    %2558 = vmatpush1.msra.mxu0 0.0
    %2559 = vmatprep.subr.mxu0 0.0
    %2560 = vmatpush1.msra.mxu0 0.0
    %2561 = vmatprep.subr.mxu0 0.0
    %2562 = vmatpush1.msra.mxu0 0.0
    %2563 = vmatprep.subr.mxu0 0.0
    %2564 = vmatpush1.msra.mxu0 0.0
    %2565 = vmatprep.subr.mxu0 0.0
    %2566 = vmatpush1.msra.mxu0 0.0
    %2567 = vmatprep.subr.mxu0 0.0
    %2568 = vmatpush1.msra.mxu0 0.0
    %2569 = vmatprep.subr.mxu0 0.0
    %2570 = vmatpush1.msra.mxu0 0.0
    %2571 = vmatprep.subr.mxu0 0.0
    %2572 = vmatpush1.msra.mxu0 0.0
    %2573 = vmatprep.subr.mxu0 0.0
    %2574 = vmatpush1.msra.mxu0 0.0
    %2575 = vmatprep.subr.mxu0 0.0
    %2576 = vmatpush1.msra.mxu0 0.0
    %2577 = vmatprep.subr.mxu0 0.0
    %2578 = vmatpush1.msra.mxu0 0.0
    %2579 = vmatprep.subr.mxu0 0.0
    %2580 = vmatpush1.msra.mxu0 0.0
    %2581 = vmatprep.subr.mxu0 0.0
    %2582 = vmatpush1.msra.mxu0 0.0
    %2583 = vmatprep.subr.mxu0 0.0
    %2584 = vmatpush1.msra.mxu0 0.0
    %2585 = vmatprep.subr.mxu0 0.0
    %2586 = vmatpush1.msra.mxu0 0.0
    %2587 = vmatprep.subr.mxu0 0.0
    %2588 = vmatpush1.msra.mxu0 0.0
    %2589 = vmatprep.subr.mxu0 0.0
    %2590 = vmatpush1.msra.mxu0 0.0
    %2591 = vmatprep.subr.mxu0 0.0
    %2592 = vmatpush1.msra.mxu0 0.0
    %2593 = vmatprep.subr.mxu0 0.0
    %2594 = vmatpush1.msra.mxu0 0.0
    %2595 = vmatprep.subr.mxu0 0.0
    %2596 = vmatpush1.msra.mxu0 0.0
    %2597 = vmatprep.subr.mxu0 0.0
    %2598 = vmatpush1.msra.mxu0 0.0
    %2599 = vmatprep.subr.mxu0 0.0
    %2600 = vmatpush1.msra.mxu0 0.0
    %2601 = vmatprep.subr.mxu0 0.0
    %2602 = vmatpush1.msra.mxu0 0.0
    %2603 = vmatprep.subr.mxu0 0.0
    %2604 = vmatpush1.msra.mxu0 0.0
    %2605 = vmatprep.subr.mxu0 0.0
    %2606 = vmatpush1.msra.mxu0 0.0
    %2607 = vmatprep.subr.mxu0 0.0
    %2608 = vmatpush1.msra.mxu0 0.0
    %2609 = vmatprep.subr.mxu0 0.0
    %2610 = vmatpush1.msra.mxu0 0.0
    %2611 = vmatprep.mubr.f32.mxu0 0.0
    %2612 = vmatmul.mubr.f32.gmra.mrb[0].mxu0 %v2542
    %v2613 = vpop.f32.mrb[0].mxu0
    %v2614 = vadd.f32 0.0, %v2613
    %v2615 = vpop.f32.mrb[0].mxu0
    %2616 = vmatprep.mubr.f32.mxu0 0.0
    %2617 = vmatmul.mubr.f32.gmra.mrb[0].mxu0 %v2545
    %v2618 = vpop.f32.mrb[0].mxu0
    %v2619 = vadd.f32 0.0, %v2618
    %v2620 = vpop.f32.mrb[0].mxu0
    %2621 = vdwg.mxu0
    %v2622 = vsel %vm54, %v2371, 0.0
    %v2623 = vsel %vm54, %v2452, 0.0
    %v2624 = vadd.f32 %v2622, %v2623
    %v2625 = vsel %vm54, %v2533, 0.0
    %v2626 = vadd.f32 %v2624, %v2625
    %v2627 = vsel %vm54, %v2614, 0.0
    %v2628 = vadd.f32 %v2626, %v2627
    %v2629 = vsel %vm54, %v2376, 0.0
    %v2630 = vsel %vm54, %v2457, 0.0
    %v2631 = vadd.f32 %v2629, %v2630
    %v2632 = vsel %vm54, %v2538, 0.0
    %v2633 = vadd.f32 %v2631, %v2632
    %v2634 = vsel %vm54, %v2619, 0.0
    %v2635 = vadd.f32 %v2633, %v2634
    %v2636 = vld [vmem:[%s2] sm:$0xff]
    %v2637 = vld [vmem:[%s2 + $0x8] sm:$0xff]
    %v2638 = vld [vmem:[%s2 + $0x10] sm:$0xff]
    %v2639 = vld [vmem:[%s2 + $0x18] sm:$0xff]
    %2640 = vmatprep.subr.mxu0 0.0
    %2641 = vmatpush1.msra.mxu0 %v2636
    %2642 = vmatprep.subr.mxu0 0.0
    %2643 = vmatpush1.msra.mxu0 %v2637
    %2644 = vmatprep.subr.mxu0 0.0
    %2645 = vmatpush1.msra.mxu0 %v2638
    %2646 = vmatprep.subr.mxu0 0.0
    %2647 = vmatpush1.msra.mxu0 %v2639
    %2648 = vmatprep.subr.mxu0 0.0
    %2649 = vmatpush1.msra.mxu0 0.0
    %2650 = vmatprep.subr.mxu0 0.0
    %2651 = vmatpush1.msra.mxu0 0.0
    %2652 = vmatprep.subr.mxu0 0.0
    %2653 = vmatpush1.msra.mxu0 0.0
    %2654 = vmatprep.subr.mxu0 0.0
    %2655 = vmatpush1.msra.mxu0 0.0
    %2656 = vmatprep.subr.mxu0 0.0
    %2657 = vmatpush1.msra.mxu0 0.0
    %2658 = vmatprep.subr.mxu0 0.0
    %2659 = vmatpush1.msra.mxu0 0.0
    %2660 = vmatprep.subr.mxu0 0.0
    %2661 = vmatpush1.msra.mxu0 0.0
    %2662 = vmatprep.subr.mxu0 0.0
    %2663 = vmatpush1.msra.mxu0 0.0
    %2664 = vmatprep.subr.mxu0 0.0
    %2665 = vmatpush1.msra.mxu0 0.0
    %2666 = vmatprep.subr.mxu0 0.0
    %2667 = vmatpush1.msra.mxu0 0.0
    %2668 = vmatprep.subr.mxu0 0.0
    %2669 = vmatpush1.msra.mxu0 0.0
    %2670 = vmatprep.subr.mxu0 0.0
    %2671 = vmatpush1.msra.mxu0 0.0
    %2672 = vmatprep.subr.mxu0 0.0
    %2673 = vmatpush1.msra.mxu0 0.0
    %2674 = vmatprep.subr.mxu0 0.0
    %2675 = vmatpush1.msra.mxu0 0.0
    %2676 = vmatprep.subr.mxu0 0.0
    %2677 = vmatpush1.msra.mxu0 0.0
    %2678 = vmatprep.subr.mxu0 0.0
    %2679 = vmatpush1.msra.mxu0 0.0
    %2680 = vmatprep.subr.mxu0 0.0
    %2681 = vmatpush1.msra.mxu0 0.0
    %2682 = vmatprep.subr.mxu0 0.0
    %2683 = vmatpush1.msra.mxu0 0.0
    %2684 = vmatprep.subr.mxu0 0.0
    %2685 = vmatpush1.msra.mxu0 0.0
    %2686 = vmatprep.subr.mxu0 0.0
    %2687 = vmatpush1.msra.mxu0 0.0
    %2688 = vmatprep.subr.mxu0 0.0
    %2689 = vmatpush1.msra.mxu0 0.0
    %2690 = vmatprep.subr.mxu0 0.0
    %2691 = vmatpush1.msra.mxu0 0.0
    %2692 = vmatprep.subr.mxu0 0.0
    %2693 = vmatpush1.msra.mxu0 0.0
    %2694 = vmatprep.subr.mxu0 0.0
    %2695 = vmatpush1.msra.mxu0 0.0
    %2696 = vmatprep.subr.mxu0 0.0
    %2697 = vmatpush1.msra.mxu0 0.0
    %2698 = vmatprep.subr.mxu0 0.0
    %2699 = vmatpush1.msra.mxu0 0.0
    %2700 = vmatprep.subr.mxu0 0.0
    %2701 = vmatpush1.msra.mxu0 0.0
    %2702 = vmatprep.subr.mxu0 0.0
    %2703 = vmatpush1.msra.mxu0 0.0
    %2704 = vmatprep.mubr.f32.mxu0 0.0
    %2705 = vmatmul.mubr.f32.gmra.mrb[0].mxu0 %v56
    %v2706 = vpop.f32.mrb[0].mxu0
    %v2707 = vadd.f32 0.0, %v2706
    %v2708 = vpop.f32.mrb[0].mxu0
    %2709 = vmatprep.mubr.f32.mxu0 0.0
    %2710 = vmatmul.mubr.f32.gmra.mrb[0].mxu0 %v59
    %v2711 = vpop.f32.mrb[0].mxu0
    %v2712 = vadd.f32 0.0, %v2711
    %v2713 = vpop.f32.mrb[0].mxu0
    %2714 = vdwg.mxu0
    %v2715 = vmul.f32 %v2707, 5.0
    %v2716 = vmul.f32 %v2712, 5.0
    %v2717 = vxor.u32 %v2715, 2147483648
    %v2718 = vxor.u32 %v2716, 2147483648
    %v2719 = vmul.f32 %v2717, 1.442695
    %v2720 = vpow.pop %v2719
    %v2721 = vmul.f32 %v2718, 1.442695
    %v2722 = vpow.pop %v2721
    %v2723 = vadd.f32 %v2720, 1.0
    %v2724 = vadd.f32 %v2722, 1.0
    %v2725 = vrcp.pop %v2723
    %v2726 = vmul.f32 1.0, %v2725
    %v2727 = vrcp.pop %v2724
    %v2728 = vmul.f32 1.0, %v2727
    %v2729 = vadd.f32 %v2726, 1e-05
    %v2730 = vadd.f32 %v2728, 1e-05
    %v2731 = vmul.f32 %v2729, 1.0986123
    %v2732 = vmul.f32 %v2730, 1.0986123
    %v2733 = vmul.f32 %v2731, 1.442695
    %v2734 = vpow.pop %v2733
    %v2735 = vmul.f32 %v2732, 1.442695
    %v2736 = vpow.pop %v2735
    %v2737 = vsub.f32 %v2734, 1.0
    %v2738 = vsub.f32 %v2736, 1.0
    %v2739 = vrcp.pop %v2737
    %v2740 = vrcp.pop %v2738
    %v2741 = vlaneseq
    %v2742 = vshrl.u32 %v2741, 7
    %v2743 = vadd.s32 %v2742, 8
    %v2744 = vlaneseq
    %v2745 = vand.u32 %v2744, 127
    %vm2746 = vcmp.lt.s32.totalorder %v2742, 0
    %v2747 = vsub.s32 0, %v2742
    %v2748 = vsel %vm2746, %v2747, %v2742
    %v2749 = vshrl.u32 %v2748, 3
    %v2750 = vand.u32 %v2748, 7
    %v2751 = vsub.s32 0, %v2750
    %v2752 = vsel %vm2746, %v2751, %v2750
    %vm2753 = vcmp.lt.s32.totalorder %v2743, 0
    %v2754 = vsub.s32 0, %v2743
    %v2755 = vsel %vm2753, %v2754, %v2743
    %v2756 = vshrl.u32 %v2755, 3
    %v2757 = vand.u32 %v2755, 7
    %v2758 = vsub.s32 0, %v2757
    %v2759 = vsel %vm2753, %v2758, %v2757
    %vm2760 = vcmp.ne.s32.totalorder %v2752, 0
    %vm2761 = vcmp.ne.s32.totalorder %v2759, 0
    %vm2762 = vcmp.lt.s32.totalorder %v2752, 0
    %vm2763 = vcmp.lt.s32.totalorder %v2759, 0
    %vm2764 = vmand %vm2762, %vm2760
    %vm2765 = vmand %vm2763, %vm2761
    %v2766 = vadd.s32 %v2752, 8
    %v2767 = vadd.s32 %v2759, 8
    %v2768 = vsel %vm2764, %v2766, %v2752
    %v2769 = vsel %vm2765, %v2767, %v2759
    %vm2770 = vcmp.lt.s32.totalorder %v2745, 0
    %v2771 = vsub.s32 0, %v2745
    %v2772 = vsel %vm2770, %v2771, %v2745
    %v2773 = vshrl.u32 %v2772, 3
    %v2774 = vand.u32 %v2772, 7
    %v2775 = vsub.s32 0, %v2774
    %v2776 = vsel %vm2770, %v2775, %v2774
    %vm2777 = vcmp.ne.s32.totalorder %v2776, 0
    %vm2778 = vcmp.lt.s32.totalorder %v2776, 0
    %vm2779 = vmand %vm2778, %vm2777
    %v2780 = vadd.s32 %v2776, 8
    %v2781 = vsel %vm2779, %v2780, %v2776
    %v2782 = vsub.s32 %v2768, %v2781
    %v2783 = vsub.s32 %v2769, %v2781
    %vm2784 = vcmp.lt.s32.totalorder %v2782, 0
    %v2785 = vsub.s32 0, %v2782
    %v2786 = vsel %vm2784, %v2785, %v2782
    %vm2787 = vcmp.lt.s32.totalorder %v2783, 0
    %v2788 = vsub.s32 0, %v2783
    %v2789 = vsel %vm2787, %v2788, %v2783
    %v2790 = vcvt.s32.f32 %v2786
    %v2791 = vcvt.s32.f32 %v2789
    %v2792 = vmul.f32 %v2739, 0.3989423
    %v2793 = vmul.f32 %v2740, 0.3989423
    %v2794 = vmul.f32 %v2790, %v2739
    %v2795 = vmul.f32 %v2791, %v2740
    %v2796 = vmul.f32 %v2794, %v2794
    %v2797 = vmul.f32 %v2795, %v2795
    %v2798 = vmul.f32 %v2796, -0.5
    %v2799 = vmul.f32 %v2797, -0.5
    %v2800 = vmul.f32 %v2798, 1.442695
    %v2801 = vpow.pop %v2800
    %v2802 = vmul.f32 %v2799, 1.442695
    %v2803 = vpow.pop %v2802
    %v2804 = vmul.f32 %v2792, %v2801
    %v2805 = vmul.f32 %v2793, %v2803
    %2808 = vrot.lane.b32.xlu0 %v2804, 32
    %v2809 = vpop.permute.xlu0 %2808
    %2810 = vrot.lane.b32.xlu0 %v2805, 32
    %v2811 = vpop.permute.xlu0 %2810
    %v2814 = vsel %vm54, %v2628, %v2809
    %v2815 = vsel %vm54, %v2635, %v2811
    %vm2816 = vcmask 523264
    %2817 = vst.msk [vmem:[#allocation5] sm:$0xff] %vm2816, %v2814
    %2818 = vst.msk [vmem:[#allocation5 + $0x8] sm:$0xff] %vm2816, %v2815
    // Predicated region
    $region18: #{tpu_custom_call.1} parent=1 // pred_check
      _
    $region19: #{tpu_custom_call.1} parent=1 // pred_check_branch
      %2820 = sbr.rel (0) target = $region21
    $region20: #{tpu_custom_call.1} parent=1 // pred_region
      %s2822 = ssub.s32 256, 256
      %2823 = vsyncadd [#allocation4], %s2822
      %s2824 = sshll.u32 [#allocation5], 4
      %s2825 = int_to_ptr.vmem [resolvable:$true] %s2824
      %2830 = dma.vmem_to_hbm [thread:$0]  %s2825, 256, %s3, [#allocation4], 128, 128, 8
    $region21: #{tpu_custom_call.1} parent=1 // pred_fallthru
      _
    // Predicated region
    $region22: #{tpu_custom_call.1} parent=1 // pred_check
      _
    $region23: #{tpu_custom_call.1} parent=1 // pred_check_branch
      %2832 = sbr.rel (0) target = $region25
    $region24: #{tpu_custom_call.1} parent=1 // pred_region
      %2833 = dma.done [#allocation4], 256
    $region25: #{tpu_custom_call.1} parent=1 // pred_fallthru
      _
    %2834 = vsyncpa [#allocation3], 1
    %2835 = vsyncpa [#allocation4], 1

</llo_original>
